<compile_context>
chip_gen: v7x
topology: tpu7x:2x2x1
jax: 0.10.0
libtpu: 0.0.40
codegen_flags: <defaults>
</compile_context>

<pallas_src>
import jax
import jax.numpy as jnp
from jax.experimental import pallas as pl
from jax.experimental.pallas import tpu as pltpu


# ----------------------------------------------------------------------------
# Kernel 1: encoder LSTM + decoder LSTM (gate order matches nn.LSTM: i, f, g, o)
# ----------------------------------------------------------------------------
def lstm_kernel(enc_x_ref, dec_x_ref,
                enc_wih_ref, enc_whh_ref, enc_b_ref,
                dec_wih_ref, dec_whh_ref, dec_b_ref,
                dec_h_ref, xp_ref):
    # enc_x_ref: (Te, Bt, E) bf16 (time-major), dec_x_ref: (Td, Bt, E) bf16
    # *_wih_ref: (E, 4H) bf16, *_whh_ref: (H, 4H) bf16, *_b_ref: (1, 4H) f32
    # dec_h_ref: (Td, Bt, H) bf16 output, xp_ref: (max(Te,Td)*Bt, 4H) f32 scratch
    Te, Bt, E = enc_x_ref.shape
    Td = dec_x_ref.shape[0]
    H = enc_whh_ref.shape[0]

    enc_whh = enc_whh_ref[...]            # (H, 4H) bf16, load once
    dec_whh = dec_whh_ref[...]

    def cell(xp_t, h, c, whh):
        # Only the recurrent matmul lives inside the time loop.  bf16 operands,
        # f32 accumulation; gate/state math stays f32 (safe on v5e too).
        gates = xp_t + jnp.dot(h.astype(jnp.bfloat16), whh,
                               preferred_element_type=jnp.float32)
        # TODO(synk): at production keep H a multiple of 128 so these slices
        # are whole-vreg views; at H=32 they are cheap in-vreg selects.
        i = jax.nn.sigmoid(gates[:, 0 * H:1 * H])
        f = jax.nn.sigmoid(gates[:, 1 * H:2 * H])
        g = jnp.tanh(gates[:, 2 * H:3 * H])
        o = jax.nn.sigmoid(gates[:, 3 * H:4 * H])
        c_new = f * c + i * g
        h_new = o * jnp.tanh(c_new)
        return h_new, c_new

    # ---- encoder -------------------------------------------------------------
    # Hoisted input projection: one (Te*Bt, E) @ (E, 4H) bf16 matmul, stored to
    # VMEM scratch so the recurrence does cheap aligned row reads.
    xp_ref[pl.ds(0, Te * Bt), :] = (
        jnp.dot(enc_x_ref[...].reshape(Te * Bt, E), enc_wih_ref[...],
                preferred_element_type=jnp.float32) + enc_b_ref[...])

    def enc_step(t, carry):
        h, c = carry
        row = pl.multiple_of(t * Bt, Bt)
        return cell(xp_ref[pl.ds(row, Bt), :], h, c, enc_whh)

    h0 = jnp.zeros((Bt, H), jnp.float32)
    c0 = jnp.zeros((Bt, H), jnp.float32)
    # unroll=True is fine for these short static sequence lengths; drop the
    # unroll at production-length T to keep the instruction stream compact.
    h, c = jax.lax.fori_loop(0, Te, enc_step, (h0, c0), unroll=True)

    # ---- decoder (initialized from encoder h, c) -----------------------------
    # Decoder projection deferred until after the encoder loop and written into
    # the SAME scratch slab -> only one projection slab live at a time.
    xp_ref[pl.ds(0, Td * Bt), :] = (
        jnp.dot(dec_x_ref[...].reshape(Td * Bt, E), dec_wih_ref[...],
                preferred_element_type=jnp.float32) + dec_b_ref[...])

    def dec_step(t, carry):
        h, c = carry
        row = pl.multiple_of(t * Bt, Bt)
        h, c = cell(xp_ref[pl.ds(row, Bt), :], h, c, dec_whh)
        # Per-step store straight into the output VMEM block (leading-axis,
        # aligned) -- no jnp.stack / relayout copies, bounded live ranges.
        dec_h_ref[pl.ds(t, 1)] = h[None].astype(dec_h_ref.dtype)
        return (h, c)

    jax.lax.fori_loop(0, Td, dec_step, (h, c), unroll=True)


# ----------------------------------------------------------------------------
# Kernel 2: fc (vocab projection), tiled over (rows, vocab)
# ----------------------------------------------------------------------------
def fc_kernel(h_ref, w_ref, b_ref, o_ref):
    # h_ref: (Nt, H) bf16, w_ref: (H, Vt) bf16, b_ref: (1, Vt) f32,
    # o_ref: (Nt, Vt) f32 (lane-dense: Vt is a multiple of 128).
    o_ref[...] = (jnp.dot(h_ref[...], w_ref[...],
                          preferred_element_type=jnp.float32)
                  + b_ref[...]).astype(o_ref.dtype)


# ----------------------------------------------------------------------------
# One-time weight preparation (transpose, bias fusion, bf16 cast, V padding)
# ----------------------------------------------------------------------------
def prepare_params(params, lane=128):
    H = params["enc_w_hh"].shape[1]
    V = params["fc_w"].shape[0]
    V_pad = ((V + lane - 1) // lane) * lane

    fc_w_t = jnp.transpose(params["fc_w"])                        # (H, V)
    fc_w_t = jnp.pad(fc_w_t, ((0, 0), (0, V_pad - V))).astype(jnp.bfloat16)
    fc_b = jnp.pad(params["fc_b"], (0, V_pad - V)).reshape(1, V_pad)

    return {
        "embedding": params["embedding"],
        "enc_wih_t": jnp.transpose(params["enc_w_ih"]).astype(jnp.bfloat16),
        "enc_whh_t": jnp.transpose(params["enc_w_hh"]).astype(jnp.bfloat16),
        "enc_b": (params["enc_b_ih"] + params["enc_b_hh"]).reshape(1, 4 * H),
        "dec_wih_t": jnp.transpose(params["dec_w_ih"]).astype(jnp.bfloat16),
        "dec_whh_t": jnp.transpose(params["dec_w_hh"]).astype(jnp.bfloat16),
        "dec_b": (params["dec_b_ih"] + params["dec_b_hh"]).reshape(1, 4 * H),
        "fc_w_t": fc_w_t,
        "fc_b": fc_b.astype(jnp.float32),
        "vocab_size": V,
    }


# ----------------------------------------------------------------------------
# Forward pass
# ----------------------------------------------------------------------------
def seq2seq_forward(prep, encoder_input, decoder_input):
    # Embedding lookup (gather) -- plain-JAX glue.
    enc_emb = prep["embedding"][encoder_input]                    # (B, Te, E)
    dec_emb = prep["embedding"][decoder_input]                    # (B, Td, E)

    B, Te, E = enc_emb.shape
    Td = dec_emb.shape[1]
    H = prep["enc_whh_t"].shape[0]
    V = prep["vocab_size"]
    V_pad = prep["fc_w_t"].shape[1]

    # Pad batch to the sublane multiple; one batch tile per grid step.
    Bt = 8
    B_pad = ((B + Bt - 1) // Bt) * Bt
    nb = B_pad // Bt
    pad_b = ((0, B_pad - B), (0, 0), (0, 0))

    # Time-major, batch-padded, bf16 MXU operands (tiny layout plumbing; keeps
    # every in-kernel per-step read a sublane-aligned leading-axis slice).
    enc_x = jnp.transpose(jnp.pad(enc_emb, pad_b), (1, 0, 2)).astype(jnp.bfloat16)
    dec_x = jnp.transpose(jnp.pad(dec_emb, pad_b), (1, 0, 2)).astype(jnp.bfloat16)

    cp_lstm = pltpu.CompilerParams(
        dimension_semantics=("parallel",),            # batch-parallel (v7x 2 TCs)
        vmem_limit_bytes=32 * 1024 * 1024)            # explicit; raise for prod

    dec_h_tbh = pl.pallas_call(
        lstm_kernel,
        out_shape=jax.ShapeDtypeStruct((Td, B_pad, H), jnp.bfloat16),
        grid=(nb,),
        in_specs=[
            pl.BlockSpec((Te, Bt, E), lambda b: (0, b, 0)),       # enc embeddings
            pl.BlockSpec((Td, Bt, E), lambda b: (0, b, 0)),       # dec embeddings
            pl.BlockSpec((E, 4 * H), lambda b: (0, 0)),           # enc W_ih^T
            pl.BlockSpec((H, 4 * H), lambda b: (0, 0)),           # enc W_hh^T
            pl.BlockSpec((1, 4 * H), lambda b: (0, 0)),           # enc bias
            pl.BlockSpec((E, 4 * H), lambda b: (0, 0)),           # dec W_ih^T
            pl.BlockSpec((H, 4 * H), lambda b: (0, 0)),           # dec W_hh^T
            pl.BlockSpec((1, 4 * H), lambda b: (0, 0)),           # dec bias
        ],
        out_specs=pl.BlockSpec((Td, Bt, H), lambda b: (0, b, 0)),
        scratch_shapes=[pltpu.VMEM((max(Te, Td) * Bt, 4 * H), jnp.float32)],
        compiler_params=cp_lstm,
    )(enc_x, dec_x,
      prep["enc_wih_t"], prep["enc_whh_t"], prep["enc_b"],
      prep["dec_wih_t"], prep["dec_whh_t"], prep["dec_b"])

    # Tiny hidden-slab reorder (B_pad*Td*H bf16) -> batch-major rows so the fc
    # output reshapes back to (B, Td, V) with no HBM transpose of the logits.
    dec_h = jnp.transpose(dec_h_tbh, (1, 0, 2)).reshape(B_pad * Td, H)

    # Tiled fc: fc weight + logits are never resident as one VMEM block.
    Nt = Bt * Td
    Vt = 512 if V_pad % 512 == 0 else 128
    cp_fc = pltpu.CompilerParams(
        dimension_semantics=("parallel", "parallel"),
        vmem_limit_bytes=32 * 1024 * 1024)

    logits_flat = pl.pallas_call(
        fc_kernel,
        out_shape=jax.ShapeDtypeStruct((B_pad * Td, V_pad), jnp.float32),
        grid=(B_pad * Td // Nt, V_pad // Vt),
        in_specs=[
            pl.BlockSpec((Nt, H), lambda i, j: (i, 0)),           # decoder hiddens
            pl.BlockSpec((H, Vt), lambda i, j: (0, j)),           # fc W^T tile
            pl.BlockSpec((1, Vt), lambda i, j: (0, j)),           # fc bias tile
        ],
        out_specs=pl.BlockSpec((Nt, Vt), lambda i, j: (i, j)),
        compiler_params=cp_fc,
    )(dec_h, prep["fc_w_t"], prep["fc_b"])

    # Contiguous reshape; slice off batch / vocab padding.
    return logits_flat.reshape(B_pad, Td, V_pad)[:B, :, :V]


# ----------------------------------------------------------------------------
# Pure-JAX reference (f32, HIGHEST precision) for correctness check
# ----------------------------------------------------------------------------
def lstm_ref(x_bte, w_ih, w_hh, b_ih, b_hh, h0, c0):
    H = h0.shape[-1]

    def step(carry, x_t):
        h, c = carry
        gates = (jnp.dot(x_t, w_ih.T, precision=jax.lax.Precision.HIGHEST)
                 + jnp.dot(h, w_hh.T, precision=jax.lax.Precision.HIGHEST)
                 + b_ih + b_hh)
        i = jax.nn.sigmoid(gates[:, 0 * H:1 * H])
        f = jax.nn.sigmoid(gates[:, 1 * H:2 * H])
        g = jnp.tanh(gates[:, 2 * H:3 * H])
        o = jax.nn.sigmoid(gates[:, 3 * H:4 * H])
        c = f * c + i * g
        h = o * jnp.tanh(c)
        return (h, c), h

    (hT, cT), outs = jax.lax.scan(step, (h0, c0),
                                  jnp.transpose(x_bte, (1, 0, 2)))
    return jnp.transpose(outs, (1, 0, 2)), hT, cT


def seq2seq_ref(params, encoder_input, decoder_input):
    enc_emb = params["embedding"][encoder_input]
    dec_emb = params["embedding"][decoder_input]
    B = enc_emb.shape[0]
    H = params["enc_w_hh"].shape[1]
    h0 = jnp.zeros((B, H), jnp.float32)
    c0 = jnp.zeros((B, H), jnp.float32)
    _, h_enc, c_enc = lstm_ref(enc_emb, params["enc_w_ih"], params["enc_w_hh"],
                               params["enc_b_ih"], params["enc_b_hh"], h0, c0)
    dec_out, _, _ = lstm_ref(dec_emb, params["dec_w_ih"], params["dec_w_hh"],
                             params["dec_b_ih"], params["dec_b_hh"], h_enc, c_enc)
    logits = (jnp.einsum("bth,vh->btv", dec_out, params["fc_w"],
                         precision=jax.lax.Precision.HIGHEST)
              + params["fc_b"])
    return logits


# ----------------------------------------------------------------------------
# Deterministic parameter init (shapes per nn.Embedding / nn.LSTM / nn.Linear)
# ----------------------------------------------------------------------------
def init_params(key, vocab_size, embedding_dim, hidden_dim):
    ks = jax.random.split(key, 12)
    k = 1.0 / jnp.sqrt(hidden_dim)

    def uni(kk, shape):
        return jax.random.uniform(kk, shape, jnp.float32, -k, k)

    emb = 0.1 * jax.random.normal(ks[0], (vocab_size, embedding_dim), jnp.float32)
    emb = emb.at[0].set(0.0)  # padding_idx=0

    return {
        "embedding": emb,
        "enc_w_ih": uni(ks[1], (4 * hidden_dim, embedding_dim)),
        "enc_w_hh": uni(ks[2], (4 * hidden_dim, hidden_dim)),
        "enc_b_ih": uni(ks[3], (4 * hidden_dim,)),
        "enc_b_hh": uni(ks[4], (4 * hidden_dim,)),
        "dec_w_ih": uni(ks[5], (4 * hidden_dim, embedding_dim)),
        "dec_w_hh": uni(ks[6], (4 * hidden_dim, hidden_dim)),
        "dec_b_ih": uni(ks[7], (4 * hidden_dim,)),
        "dec_b_hh": uni(ks[8], (4 * hidden_dim,)),
        "fc_w": uni(ks[9], (vocab_size, hidden_dim)),
        "fc_b": uni(ks[10], (vocab_size,)),
    }


if __name__ == "__main__":
    VOCAB = 64          # len(tokenizer.word_index) + 1
    EMB = 16            # embedding_dim
    HID = 32            # hidden_dim
    B = 2               # batch
    T_ENC = 8           # encoder sequence length
    T_DEC = 8           # decoder sequence length

    key = jax.random.PRNGKey(0)
    pkey, ekey, dkey = jax.random.split(key, 3)
    params = init_params(pkey, VOCAB, EMB, HID)
    prep = prepare_params(params)        # one-time weight prep (not per call)

    encoder_input = jax.random.randint(ekey, (B, T_ENC), 0, VOCAB, dtype=jnp.int32)
    decoder_input = jax.random.randint(dkey, (B, T_DEC), 0, VOCAB, dtype=jnp.int32)

    out = seq2seq_forward(prep, encoder_input, decoder_input)
    out = jax.block_until_ready(out)

    ref = seq2seq_ref(params, encoder_input, decoder_input)
    assert out.shape == (B, T_DEC, VOCAB), out.shape
    # Tolerance widened vs. the pure-f32 version: kernel matmuls use bf16 MXU
    # operands with f32 accumulation.
    max_err = float(jnp.max(jnp.abs(out - ref)))
    assert jnp.allclose(out, ref, atol=2e-2, rtol=2e-2), max_err

    print("KERNEL_OK")
</pallas_src>

<mosaic_0001>
module attributes {stable_mosaic.version = 11 : i64} {
  func.func @lstm_kernel(%arg0: i32, %arg1: memref<8x8x16xbf16, #tpu.memory_space<vmem>>, %arg2: memref<8x8x16xbf16, #tpu.memory_space<vmem>>, %arg3: memref<16x128xbf16, #tpu.memory_space<vmem>>, %arg4: memref<32x128xbf16, #tpu.memory_space<vmem>>, %arg5: memref<1x128xf32, #tpu.memory_space<vmem>>, %arg6: memref<16x128xbf16, #tpu.memory_space<vmem>>, %arg7: memref<32x128xbf16, #tpu.memory_space<vmem>>, %arg8: memref<1x128xf32, #tpu.memory_space<vmem>>, %arg9: memref<8x8x32xbf16, #tpu.memory_space<vmem>>, %arg10: memref<64x128xf32, #tpu.memory_space<vmem>>) attributes {dimension_semantics = [#tpu.dimension_semantics<parallel>], iteration_bounds = array<i64: 1>, scalar_prefetch = 0 : i64, scratch_operands = 1 : i64, tpu.core_type = #tpu.core_type<tc>, window_params = [{transform_indices = @transform_0, window_bounds = array<i64: 8, 8, 16>}, {transform_indices = @transform_1, window_bounds = array<i64: 8, 8, 16>}, {pipeline_mode = #tpu.pipeline_mode<synchronous>, transform_indices = @transform_2, window_bounds = array<i64: 16, 128>}, {pipeline_mode = #tpu.pipeline_mode<synchronous>, transform_indices = @transform_3, window_bounds = array<i64: 32, 128>}, {pipeline_mode = #tpu.pipeline_mode<synchronous>, transform_indices = @transform_4, window_bounds = array<i64: 1, 128>}, {pipeline_mode = #tpu.pipeline_mode<synchronous>, transform_indices = @transform_5, window_bounds = array<i64: 16, 128>}, {pipeline_mode = #tpu.pipeline_mode<synchronous>, transform_indices = @transform_6, window_bounds = array<i64: 32, 128>}, {pipeline_mode = #tpu.pipeline_mode<synchronous>, transform_indices = @transform_7, window_bounds = array<i64: 1, 128>}, {transform_indices = @transform_8, window_bounds = array<i64: 8, 8, 32>}]} {
    %c0 = arith.constant 0 : index
    %c0_0 = arith.constant 0 : index
    %0 = vector.load %arg4[%c0, %c0_0] : memref<32x128xbf16, #tpu.memory_space<vmem>>, vector<32x128xbf16>
    %c0_1 = arith.constant 0 : index
    %c0_2 = arith.constant 0 : index
    %1 = vector.load %arg7[%c0_1, %c0_2] : memref<32x128xbf16, #tpu.memory_space<vmem>>, vector<32x128xbf16>
    %c0_3 = arith.constant 0 : index
    %c0_4 = arith.constant 0 : index
    %c0_5 = arith.constant 0 : index
    %2 = vector.load %arg1[%c0_3, %c0_4, %c0_5] : memref<8x8x16xbf16, #tpu.memory_space<vmem>>, vector<8x8x16xbf16>
    %3 = vector.shape_cast %2 : vector<8x8x16xbf16> to vector<64x16xbf16>
    %c0_6 = arith.constant 0 : index
    %c0_7 = arith.constant 0 : index
    %4 = vector.load %arg3[%c0_6, %c0_7] : memref<16x128xbf16, #tpu.memory_space<vmem>>, vector<16x128xbf16>
    %cst = arith.constant dense<0.000000e+00> : vector<64x128xf32>
    %5 = tpu.matmul %3, %4, %cst {dimension_numbers = #tpu.dot_dimension_numbers<[1], [0], [0], [1], [0, 0, 1, 1], [], []>} : vector<64x16xbf16>, vector<16x128xbf16>, vector<64x128xf32> -> vector<64x128xf32>
    %c0_8 = arith.constant 0 : index
    %c0_9 = arith.constant 0 : index
    %6 = vector.load %arg5[%c0_8, %c0_9] : memref<1x128xf32, #tpu.memory_space<vmem>>, vector<1x128xf32>
    %7 = vector.broadcast %6 : vector<1x128xf32> to vector<64x128xf32>
    %8 = arith.addf %5, %7 : vector<64x128xf32>
    %c0_10 = arith.constant 0 : index
    %c0_11 = arith.constant 0 : index
    %9 = vector.load %arg10[%c0_10, %c0_11] : memref<64x128xf32, #tpu.memory_space<vmem>>, vector<64x128xf32>
    tpu.vector_store %arg10[%c0_10, %c0_11], %8 {strides = array<i32>} : memref<64x128xf32, #tpu.memory_space<vmem>>, vector<64x128xf32>,
    %cst_12 = arith.constant 0.000000e+00 : f32
    %10 = vector.broadcast %cst_12 : f32 to vector<8x32xf32>
    %cst_13 = arith.constant 0.000000e+00 : f32
    %11 = vector.broadcast %cst_13 : f32 to vector<8x32xf32>
    %c0_i32 = arith.constant 0 : i32
    %c8_i32 = arith.constant 8 : i32
    %12 = arith.muli %c0_i32, %c8_i32 : i32
    %13 = tpu.assume_multiple %12, 8 : i32
    %14 = arith.index_cast %13 : i32 to index
    %c0_14 = arith.constant 0 : index
    %15 = vector.load %arg10[%14, %c0_14] : memref<64x128xf32, #tpu.memory_space<vmem>>, vector<8x128xf32>
    %16 = arith.truncf %10 : vector<8x32xf32> to vector<8x32xbf16>
    %cst_15 = arith.constant dense<0.000000e+00> : vector<8x128xf32>
    %17 = tpu.matmul %16, %0, %cst_15 {dimension_numbers = #tpu.dot_dimension_numbers<[1], [0], [0], [1], [0, 0, 1, 1], [], []>} : vector<8x32xbf16>, vector<32x128xbf16>, vector<8x128xf32> -> vector<8x128xf32>
    %18 = arith.addf %15, %17 : vector<8x128xf32>
    %19 = vector.extract_strided_slice %18 {offsets = [0, 0], sizes = [8, 32], strides = [1, 1]} : vector<8x128xf32> to vector<8x32xf32>
    %20 = arith.negf %19 : vector<8x32xf32>
    %21 = math.exp %20 : vector<8x32xf32>
    %cst_16 = arith.constant 1.000000e+00 : f32
    %22 = vector.broadcast %cst_16 : f32 to vector<8x32xf32>
    %23 = arith.addf %22, %21 : vector<8x32xf32>
    %24 = arith.divf %22, %23 : vector<8x32xf32>
    %25 = vector.extract_strided_slice %18 {offsets = [0, 32], sizes = [8, 32], strides = [1, 1]} : vector<8x128xf32> to vector<8x32xf32>
    %26 = arith.negf %25 : vector<8x32xf32>
    %27 = math.exp %26 : vector<8x32xf32>
    %cst_17 = arith.constant 1.000000e+00 : f32
    %28 = vector.broadcast %cst_17 : f32 to vector<8x32xf32>
    %29 = arith.addf %28, %27 : vector<8x32xf32>
    %30 = arith.divf %28, %29 : vector<8x32xf32>
    %31 = vector.extract_strided_slice %18 {offsets = [0, 64], sizes = [8, 32], strides = [1, 1]} : vector<8x128xf32> to vector<8x32xf32>
    %32 = math.tanh %31 : vector<8x32xf32>
    %33 = vector.extract_strided_slice %18 {offsets = [0, 96], sizes = [8, 32], strides = [1, 1]} : vector<8x128xf32> to vector<8x32xf32>
    %34 = arith.negf %33 : vector<8x32xf32>
    %35 = math.exp %34 : vector<8x32xf32>
    %cst_18 = arith.constant 1.000000e+00 : f32
    %36 = vector.broadcast %cst_18 : f32 to vector<8x32xf32>
    %37 = arith.addf %36, %35 : vector<8x32xf32>
    %38 = arith.divf %36, %37 : vector<8x32xf32>
    %39 = arith.mulf %30, %11 : vector<8x32xf32>
    %40 = arith.mulf %24, %32 : vector<8x32xf32>
    %41 = arith.addf %39, %40 : vector<8x32xf32>
    %42 = math.tanh %41 : vector<8x32xf32>
    %43 = arith.mulf %38, %42 : vector<8x32xf32>
    %c1_i32 = arith.constant 1 : i32
    %c8_i32_19 = arith.constant 8 : i32
    %44 = arith.muli %c1_i32, %c8_i32_19 : i32
    %45 = tpu.assume_multiple %44, 8 : i32
    %46 = arith.index_cast %45 : i32 to index
    %c0_20 = arith.constant 0 : index
    %47 = vector.load %arg10[%46, %c0_20] : memref<64x128xf32, #tpu.memory_space<vmem>>, vector<8x128xf32>
    %48 = arith.truncf %43 : vector<8x32xf32> to vector<8x32xbf16>
    %cst_21 = arith.constant dense<0.000000e+00> : vector<8x128xf32>
    %49 = tpu.matmul %48, %0, %cst_21 {dimension_numbers = #tpu.dot_dimension_numbers<[1], [0], [0], [1], [0, 0, 1, 1], [], []>} : vector<8x32xbf16>, vector<32x128xbf16>, vector<8x128xf32> -> vector<8x128xf32>
    %50 = arith.addf %47, %49 : vector<8x128xf32>
    %51 = vector.extract_strided_slice %50 {offsets = [0, 0], sizes = [8, 32], strides = [1, 1]} : vector<8x128xf32> to vector<8x32xf32>
    %52 = arith.negf %51 : vector<8x32xf32>
    %53 = math.exp %52 : vector<8x32xf32>
    %cst_22 = arith.constant 1.000000e+00 : f32
    %54 = vector.broadcast %cst_22 : f32 to vector<8x32xf32>
    %55 = arith.addf %54, %53 : vector<8x32xf32>
    %56 = arith.divf %54, %55 : vector<8x32xf32>
    %57 = vector.extract_strided_slice %50 {offsets = [0, 32], sizes = [8, 32], strides = [1, 1]} : vector<8x128xf32> to vector<8x32xf32>
    %58 = arith.negf %57 : vector<8x32xf32>
    %59 = math.exp %58 : vector<8x32xf32>
    %cst_23 = arith.constant 1.000000e+00 : f32
    %60 = vector.broadcast %cst_23 : f32 to vector<8x32xf32>
    %61 = arith.addf %60, %59 : vector<8x32xf32>
    %62 = arith.divf %60, %61 : vector<8x32xf32>
    %63 = vector.extract_strided_slice %50 {offsets = [0, 64], sizes = [8, 32], strides = [1, 1]} : vector<8x128xf32> to vector<8x32xf32>
    %64 = math.tanh %63 : vector<8x32xf32>
    %65 = vector.extract_strided_slice %50 {offsets = [0, 96], sizes = [8, 32], strides = [1, 1]} : vector<8x128xf32> to vector<8x32xf32>
    %66 = arith.negf %65 : vector<8x32xf32>
    %67 = math.exp %66 : vector<8x32xf32>
    %cst_24 = arith.constant 1.000000e+00 : f32
    %68 = vector.broadcast %cst_24 : f32 to vector<8x32xf32>
    %69 = arith.addf %68, %67 : vector<8x32xf32>
    %70 = arith.divf %68, %69 : vector<8x32xf32>
    %71 = arith.mulf %62, %41 : vector<8x32xf32>
    %72 = arith.mulf %56, %64 : vector<8x32xf32>
    %73 = arith.addf %71, %72 : vector<8x32xf32>
    %74 = math.tanh %73 : vector<8x32xf32>
    %75 = arith.mulf %70, %74 : vector<8x32xf32>
    %c2_i32 = arith.constant 2 : i32
    %c8_i32_25 = arith.constant 8 : i32
    %76 = arith.muli %c2_i32, %c8_i32_25 : i32
    %77 = tpu.assume_multiple %76, 8 : i32
    %78 = arith.index_cast %77 : i32 to index
    %c0_26 = arith.constant 0 : index
    %79 = vector.load %arg10[%78, %c0_26] : memref<64x128xf32, #tpu.memory_space<vmem>>, vector<8x128xf32>
    %80 = arith.truncf %75 : vector<8x32xf32> to vector<8x32xbf16>
    %cst_27 = arith.constant dense<0.000000e+00> : vector<8x128xf32>
    %81 = tpu.matmul %80, %0, %cst_27 {dimension_numbers = #tpu.dot_dimension_numbers<[1], [0], [0], [1], [0, 0, 1, 1], [], []>} : vector<8x32xbf16>, vector<32x128xbf16>, vector<8x128xf32> -> vector<8x128xf32>
    %82 = arith.addf %79, %81 : vector<8x128xf32>
    %83 = vector.extract_strided_slice %82 {offsets = [0, 0], sizes = [8, 32], strides = [1, 1]} : vector<8x128xf32> to vector<8x32xf32>
    %84 = arith.negf %83 : vector<8x32xf32>
    %85 = math.exp %84 : vector<8x32xf32>
    %cst_28 = arith.constant 1.000000e+00 : f32
    %86 = vector.broadcast %cst_28 : f32 to vector<8x32xf32>
    %87 = arith.addf %86, %85 : vector<8x32xf32>
    %88 = arith.divf %86, %87 : vector<8x32xf32>
    %89 = vector.extract_strided_slice %82 {offsets = [0, 32], sizes = [8, 32], strides = [1, 1]} : vector<8x128xf32> to vector<8x32xf32>
    %90 = arith.negf %89 : vector<8x32xf32>
    %91 = math.exp %90 : vector<8x32xf32>
    %cst_29 = arith.constant 1.000000e+00 : f32
    %92 = vector.broadcast %cst_29 : f32 to vector<8x32xf32>
    %93 = arith.addf %92, %91 : vector<8x32xf32>
    %94 = arith.divf %92, %93 : vector<8x32xf32>
    %95 = vector.extract_strided_slice %82 {offsets = [0, 64], sizes = [8, 32], strides = [1, 1]} : vector<8x128xf32> to vector<8x32xf32>
    %96 = math.tanh %95 : vector<8x32xf32>
    %97 = vector.extract_strided_slice %82 {offsets = [0, 96], sizes = [8, 32], strides = [1, 1]} : vector<8x128xf32> to vector<8x32xf32>
    %98 = arith.negf %97 : vector<8x32xf32>
    %99 = math.exp %98 : vector<8x32xf32>
    %cst_30 = arith.constant 1.000000e+00 : f32
    %100 = vector.broadcast %cst_30 : f32 to vector<8x32xf32>
    %101 = arith.addf %100, %99 : vector<8x32xf32>
    %102 = arith.divf %100, %101 : vector<8x32xf32>
    %103 = arith.mulf %94, %73 : vector<8x32xf32>
    %104 = arith.mulf %88, %96 : vector<8x32xf32>
    %105 = arith.addf %103, %104 : vector<8x32xf32>
    %106 = math.tanh %105 : vector<8x32xf32>
    %107 = arith.mulf %102, %106 : vector<8x32xf32>
    %c3_i32 = arith.constant 3 : i32
    %c8_i32_31 = arith.constant 8 : i32
    %108 = arith.muli %c3_i32, %c8_i32_31 : i32
    %109 = tpu.assume_multiple %108, 8 : i32
    %110 = arith.index_cast %109 : i32 to index
    %c0_32 = arith.constant 0 : index
    %111 = vector.load %arg10[%110, %c0_32] : memref<64x128xf32, #tpu.memory_space<vmem>>, vector<8x128xf32>
    %112 = arith.truncf %107 : vector<8x32xf32> to vector<8x32xbf16>
    %cst_33 = arith.constant dense<0.000000e+00> : vector<8x128xf32>
    %113 = tpu.matmul %112, %0, %cst_33 {dimension_numbers = #tpu.dot_dimension_numbers<[1], [0], [0], [1], [0, 0, 1, 1], [], []>} : vector<8x32xbf16>, vector<32x128xbf16>, vector<8x128xf32> -> vector<8x128xf32>
    %114 = arith.addf %111, %113 : vector<8x128xf32>
    %115 = vector.extract_strided_slice %114 {offsets = [0, 0], sizes = [8, 32], strides = [1, 1]} : vector<8x128xf32> to vector<8x32xf32>
    %116 = arith.negf %115 : vector<8x32xf32>
    %117 = math.exp %116 : vector<8x32xf32>
    %cst_34 = arith.constant 1.000000e+00 : f32
    %118 = vector.broadcast %cst_34 : f32 to vector<8x32xf32>
    %119 = arith.addf %118, %117 : vector<8x32xf32>
    %120 = arith.divf %118, %119 : vector<8x32xf32>
    %121 = vector.extract_strided_slice %114 {offsets = [0, 32], sizes = [8, 32], strides = [1, 1]} : vector<8x128xf32> to vector<8x32xf32>
    %122 = arith.negf %121 : vector<8x32xf32>
    %123 = math.exp %122 : vector<8x32xf32>
    %cst_35 = arith.constant 1.000000e+00 : f32
    %124 = vector.broadcast %cst_35 : f32 to vector<8x32xf32>
    %125 = arith.addf %124, %123 : vector<8x32xf32>
    %126 = arith.divf %124, %125 : vector<8x32xf32>
    %127 = vector.extract_strided_slice %114 {offsets = [0, 64], sizes = [8, 32], strides = [1, 1]} : vector<8x128xf32> to vector<8x32xf32>
    %128 = math.tanh %127 : vector<8x32xf32>
    %129 = vector.extract_strided_slice %114 {offsets = [0, 96], sizes = [8, 32], strides = [1, 1]} : vector<8x128xf32> to vector<8x32xf32>
    %130 = arith.negf %129 : vector<8x32xf32>
    %131 = math.exp %130 : vector<8x32xf32>
    %cst_36 = arith.constant 1.000000e+00 : f32
    %132 = vector.broadcast %cst_36 : f32 to vector<8x32xf32>
    %133 = arith.addf %132, %131 : vector<8x32xf32>
    %134 = arith.divf %132, %133 : vector<8x32xf32>
    %135 = arith.mulf %126, %105 : vector<8x32xf32>
    %136 = arith.mulf %120, %128 : vector<8x32xf32>
    %137 = arith.addf %135, %136 : vector<8x32xf32>
    %138 = math.tanh %137 : vector<8x32xf32>
    %139 = arith.mulf %134, %138 : vector<8x32xf32>
    %c4_i32 = arith.constant 4 : i32
    %c8_i32_37 = arith.constant 8 : i32
    %140 = arith.muli %c4_i32, %c8_i32_37 : i32
    %141 = tpu.assume_multiple %140, 8 : i32
    %142 = arith.index_cast %141 : i32 to index
    %c0_38 = arith.constant 0 : index
    %143 = vector.load %arg10[%142, %c0_38] : memref<64x128xf32, #tpu.memory_space<vmem>>, vector<8x128xf32>
    %144 = arith.truncf %139 : vector<8x32xf32> to vector<8x32xbf16>
    %cst_39 = arith.constant dense<0.000000e+00> : vector<8x128xf32>
    %145 = tpu.matmul %144, %0, %cst_39 {dimension_numbers = #tpu.dot_dimension_numbers<[1], [0], [0], [1], [0, 0, 1, 1], [], []>} : vector<8x32xbf16>, vector<32x128xbf16>, vector<8x128xf32> -> vector<8x128xf32>
    %146 = arith.addf %143, %145 : vector<8x128xf32>
    %147 = vector.extract_strided_slice %146 {offsets = [0, 0], sizes = [8, 32], strides = [1, 1]} : vector<8x128xf32> to vector<8x32xf32>
    %148 = arith.negf %147 : vector<8x32xf32>
    %149 = math.exp %148 : vector<8x32xf32>
    %cst_40 = arith.constant 1.000000e+00 : f32
    %150 = vector.broadcast %cst_40 : f32 to vector<8x32xf32>
    %151 = arith.addf %150, %149 : vector<8x32xf32>
    %152 = arith.divf %150, %151 : vector<8x32xf32>
    %153 = vector.extract_strided_slice %146 {offsets = [0, 32], sizes = [8, 32], strides = [1, 1]} : vector<8x128xf32> to vector<8x32xf32>
    %154 = arith.negf %153 : vector<8x32xf32>
    %155 = math.exp %154 : vector<8x32xf32>
    %cst_41 = arith.constant 1.000000e+00 : f32
    %156 = vector.broadcast %cst_41 : f32 to vector<8x32xf32>
    %157 = arith.addf %156, %155 : vector<8x32xf32>
    %158 = arith.divf %156, %157 : vector<8x32xf32>
    %159 = vector.extract_strided_slice %146 {offsets = [0, 64], sizes = [8, 32], strides = [1, 1]} : vector<8x128xf32> to vector<8x32xf32>
    %160 = math.tanh %159 : vector<8x32xf32>
    %161 = vector.extract_strided_slice %146 {offsets = [0, 96], sizes = [8, 32], strides = [1, 1]} : vector<8x128xf32> to vector<8x32xf32>
    %162 = arith.negf %161 : vector<8x32xf32>
    %163 = math.exp %162 : vector<8x32xf32>
    %cst_42 = arith.constant 1.000000e+00 : f32
    %164 = vector.broadcast %cst_42 : f32 to vector<8x32xf32>
    %165 = arith.addf %164, %163 : vector<8x32xf32>
    %166 = arith.divf %164, %165 : vector<8x32xf32>
    %167 = arith.mulf %158, %137 : vector<8x32xf32>
    %168 = arith.mulf %152, %160 : vector<8x32xf32>
    %169 = arith.addf %167, %168 : vector<8x32xf32>
    %170 = math.tanh %169 : vector<8x32xf32>
    %171 = arith.mulf %166, %170 : vector<8x32xf32>
    %c5_i32 = arith.constant 5 : i32
    %c8_i32_43 = arith.constant 8 : i32
    %172 = arith.muli %c5_i32, %c8_i32_43 : i32
    %173 = tpu.assume_multiple %172, 8 : i32
    %174 = arith.index_cast %173 : i32 to index
    %c0_44 = arith.constant 0 : index
    %175 = vector.load %arg10[%174, %c0_44] : memref<64x128xf32, #tpu.memory_space<vmem>>, vector<8x128xf32>
    %176 = arith.truncf %171 : vector<8x32xf32> to vector<8x32xbf16>
    %cst_45 = arith.constant dense<0.000000e+00> : vector<8x128xf32>
    %177 = tpu.matmul %176, %0, %cst_45 {dimension_numbers = #tpu.dot_dimension_numbers<[1], [0], [0], [1], [0, 0, 1, 1], [], []>} : vector<8x32xbf16>, vector<32x128xbf16>, vector<8x128xf32> -> vector<8x128xf32>
    %178 = arith.addf %175, %177 : vector<8x128xf32>
    %179 = vector.extract_strided_slice %178 {offsets = [0, 0], sizes = [8, 32], strides = [1, 1]} : vector<8x128xf32> to vector<8x32xf32>
    %180 = arith.negf %179 : vector<8x32xf32>
    %181 = math.exp %180 : vector<8x32xf32>
    %cst_46 = arith.constant 1.000000e+00 : f32
    %182 = vector.broadcast %cst_46 : f32 to vector<8x32xf32>
    %183 = arith.addf %182, %181 : vector<8x32xf32>
    %184 = arith.divf %182, %183 : vector<8x32xf32>
    %185 = vector.extract_strided_slice %178 {offsets = [0, 32], sizes = [8, 32], strides = [1, 1]} : vector<8x128xf32> to vector<8x32xf32>
    %186 = arith.negf %185 : vector<8x32xf32>
    %187 = math.exp %186 : vector<8x32xf32>
    %cst_47 = arith.constant 1.000000e+00 : f32
    %188 = vector.broadcast %cst_47 : f32 to vector<8x32xf32>
    %189 = arith.addf %188, %187 : vector<8x32xf32>
    %190 = arith.divf %188, %189 : vector<8x32xf32>
    %191 = vector.extract_strided_slice %178 {offsets = [0, 64], sizes = [8, 32], strides = [1, 1]} : vector<8x128xf32> to vector<8x32xf32>
    %192 = math.tanh %191 : vector<8x32xf32>
    %193 = vector.extract_strided_slice %178 {offsets = [0, 96], sizes = [8, 32], strides = [1, 1]} : vector<8x128xf32> to vector<8x32xf32>
    %194 = arith.negf %193 : vector<8x32xf32>
    %195 = math.exp %194 : vector<8x32xf32>
    %cst_48 = arith.constant 1.000000e+00 : f32
    %196 = vector.broadcast %cst_48 : f32 to vector<8x32xf32>
    %197 = arith.addf %196, %195 : vector<8x32xf32>
    %198 = arith.divf %196, %197 : vector<8x32xf32>
    %199 = arith.mulf %190, %169 : vector<8x32xf32>
    %200 = arith.mulf %184, %192 : vector<8x32xf32>
    %201 = arith.addf %199, %200 : vector<8x32xf32>
    %202 = math.tanh %201 : vector<8x32xf32>
    %203 = arith.mulf %198, %202 : vector<8x32xf32>
    %c6_i32 = arith.constant 6 : i32
    %c8_i32_49 = arith.constant 8 : i32
    %204 = arith.muli %c6_i32, %c8_i32_49 : i32
    %205 = tpu.assume_multiple %204, 8 : i32
    %206 = arith.index_cast %205 : i32 to index
    %c0_50 = arith.constant 0 : index
    %207 = vector.load %arg10[%206, %c0_50] : memref<64x128xf32, #tpu.memory_space<vmem>>, vector<8x128xf32>
    %208 = arith.truncf %203 : vector<8x32xf32> to vector<8x32xbf16>
    %cst_51 = arith.constant dense<0.000000e+00> : vector<8x128xf32>
    %209 = tpu.matmul %208, %0, %cst_51 {dimension_numbers = #tpu.dot_dimension_numbers<[1], [0], [0], [1], [0, 0, 1, 1], [], []>} : vector<8x32xbf16>, vector<32x128xbf16>, vector<8x128xf32> -> vector<8x128xf32>
    %210 = arith.addf %207, %209 : vector<8x128xf32>
    %211 = vector.extract_strided_slice %210 {offsets = [0, 0], sizes = [8, 32], strides = [1, 1]} : vector<8x128xf32> to vector<8x32xf32>
    %212 = arith.negf %211 : vector<8x32xf32>
    %213 = math.exp %212 : vector<8x32xf32>
    %cst_52 = arith.constant 1.000000e+00 : f32
    %214 = vector.broadcast %cst_52 : f32 to vector<8x32xf32>
    %215 = arith.addf %214, %213 : vector<8x32xf32>
    %216 = arith.divf %214, %215 : vector<8x32xf32>
    %217 = vector.extract_strided_slice %210 {offsets = [0, 32], sizes = [8, 32], strides = [1, 1]} : vector<8x128xf32> to vector<8x32xf32>
    %218 = arith.negf %217 : vector<8x32xf32>
    %219 = math.exp %218 : vector<8x32xf32>
    %cst_53 = arith.constant 1.000000e+00 : f32
    %220 = vector.broadcast %cst_53 : f32 to vector<8x32xf32>
    %221 = arith.addf %220, %219 : vector<8x32xf32>
    %222 = arith.divf %220, %221 : vector<8x32xf32>
    %223 = vector.extract_strided_slice %210 {offsets = [0, 64], sizes = [8, 32], strides = [1, 1]} : vector<8x128xf32> to vector<8x32xf32>
    %224 = math.tanh %223 : vector<8x32xf32>
    %225 = vector.extract_strided_slice %210 {offsets = [0, 96], sizes = [8, 32], strides = [1, 1]} : vector<8x128xf32> to vector<8x32xf32>
    %226 = arith.negf %225 : vector<8x32xf32>
    %227 = math.exp %226 : vector<8x32xf32>
    %cst_54 = arith.constant 1.000000e+00 : f32
    %228 = vector.broadcast %cst_54 : f32 to vector<8x32xf32>
    %229 = arith.addf %228, %227 : vector<8x32xf32>
    %230 = arith.divf %228, %229 : vector<8x32xf32>
    %231 = arith.mulf %222, %201 : vector<8x32xf32>
    %232 = arith.mulf %216, %224 : vector<8x32xf32>
    %233 = arith.addf %231, %232 : vector<8x32xf32>
    %234 = math.tanh %233 : vector<8x32xf32>
    %235 = arith.mulf %230, %234 : vector<8x32xf32>
    %c7_i32 = arith.constant 7 : i32
    %c8_i32_55 = arith.constant 8 : i32
    %236 = arith.muli %c7_i32, %c8_i32_55 : i32
    %237 = tpu.assume_multiple %236, 8 : i32
    %238 = arith.index_cast %237 : i32 to index
    %c0_56 = arith.constant 0 : index
    %239 = vector.load %arg10[%238, %c0_56] : memref<64x128xf32, #tpu.memory_space<vmem>>, vector<8x128xf32>
    %240 = arith.truncf %235 : vector<8x32xf32> to vector<8x32xbf16>
    %cst_57 = arith.constant dense<0.000000e+00> : vector<8x128xf32>
    %241 = tpu.matmul %240, %0, %cst_57 {dimension_numbers = #tpu.dot_dimension_numbers<[1], [0], [0], [1], [0, 0, 1, 1], [], []>} : vector<8x32xbf16>, vector<32x128xbf16>, vector<8x128xf32> -> vector<8x128xf32>
    %242 = arith.addf %239, %241 : vector<8x128xf32>
    %243 = vector.extract_strided_slice %242 {offsets = [0, 0], sizes = [8, 32], strides = [1, 1]} : vector<8x128xf32> to vector<8x32xf32>
    %244 = arith.negf %243 : vector<8x32xf32>
    %245 = math.exp %244 : vector<8x32xf32>
    %cst_58 = arith.constant 1.000000e+00 : f32
    %246 = vector.broadcast %cst_58 : f32 to vector<8x32xf32>
    %247 = arith.addf %246, %245 : vector<8x32xf32>
    %248 = arith.divf %246, %247 : vector<8x32xf32>
    %249 = vector.extract_strided_slice %242 {offsets = [0, 32], sizes = [8, 32], strides = [1, 1]} : vector<8x128xf32> to vector<8x32xf32>
    %250 = arith.negf %249 : vector<8x32xf32>
    %251 = math.exp %250 : vector<8x32xf32>
    %cst_59 = arith.constant 1.000000e+00 : f32
    %252 = vector.broadcast %cst_59 : f32 to vector<8x32xf32>
    %253 = arith.addf %252, %251 : vector<8x32xf32>
    %254 = arith.divf %252, %253 : vector<8x32xf32>
    %255 = vector.extract_strided_slice %242 {offsets = [0, 64], sizes = [8, 32], strides = [1, 1]} : vector<8x128xf32> to vector<8x32xf32>
    %256 = math.tanh %255 : vector<8x32xf32>
    %257 = vector.extract_strided_slice %242 {offsets = [0, 96], sizes = [8, 32], strides = [1, 1]} : vector<8x128xf32> to vector<8x32xf32>
    %258 = arith.negf %257 : vector<8x32xf32>
    %259 = math.exp %258 : vector<8x32xf32>
    %cst_60 = arith.constant 1.000000e+00 : f32
    %260 = vector.broadcast %cst_60 : f32 to vector<8x32xf32>
    %261 = arith.addf %260, %259 : vector<8x32xf32>
    %262 = arith.divf %260, %261 : vector<8x32xf32>
    %263 = arith.mulf %254, %233 : vector<8x32xf32>
    %264 = arith.mulf %248, %256 : vector<8x32xf32>
    %265 = arith.addf %263, %264 : vector<8x32xf32>
    %266 = math.tanh %265 : vector<8x32xf32>
    %267 = arith.mulf %262, %266 : vector<8x32xf32>
    %c8_i32_61 = arith.constant 8 : i32
    %c0_62 = arith.constant 0 : index
    %c0_63 = arith.constant 0 : index
    %c0_64 = arith.constant 0 : index
    %268 = vector.load %arg2[%c0_62, %c0_63, %c0_64] : memref<8x8x16xbf16, #tpu.memory_space<vmem>>, vector<8x8x16xbf16>
    %269 = vector.shape_cast %268 : vector<8x8x16xbf16> to vector<64x16xbf16>
    %c0_65 = arith.constant 0 : index
    %c0_66 = arith.constant 0 : index
    %270 = vector.load %arg6[%c0_65, %c0_66] : memref<16x128xbf16, #tpu.memory_space<vmem>>, vector<16x128xbf16>
    %cst_67 = arith.constant dense<0.000000e+00> : vector<64x128xf32>
    %271 = tpu.matmul %269, %270, %cst_67 {dimension_numbers = #tpu.dot_dimension_numbers<[1], [0], [0], [1], [0, 0, 1, 1], [], []>} : vector<64x16xbf16>, vector<16x128xbf16>, vector<64x128xf32> -> vector<64x128xf32>
    %c0_68 = arith.constant 0 : index
    %c0_69 = arith.constant 0 : index
    %272 = vector.load %arg8[%c0_68, %c0_69] : memref<1x128xf32, #tpu.memory_space<vmem>>, vector<1x128xf32>
    %273 = vector.broadcast %272 : vector<1x128xf32> to vector<64x128xf32>
    %274 = arith.addf %271, %273 : vector<64x128xf32>
    %c0_70 = arith.constant 0 : index
    %c0_71 = arith.constant 0 : index
    %275 = vector.load %arg10[%c0_70, %c0_71] : memref<64x128xf32, #tpu.memory_space<vmem>>, vector<64x128xf32>
    tpu.vector_store %arg10[%c0_70, %c0_71], %274 {strides = array<i32>} : memref<64x128xf32, #tpu.memory_space<vmem>>, vector<64x128xf32>,
    %c0_i32_72 = arith.constant 0 : i32
    %c8_i32_73 = arith.constant 8 : i32
    %276 = arith.muli %c0_i32_72, %c8_i32_73 : i32
    %277 = tpu.assume_multiple %276, 8 : i32
    %278 = arith.index_cast %277 : i32 to index
    %c0_74 = arith.constant 0 : index
    %279 = vector.load %arg10[%278, %c0_74] : memref<64x128xf32, #tpu.memory_space<vmem>>, vector<8x128xf32>
    %280 = arith.truncf %267 : vector<8x32xf32> to vector<8x32xbf16>
    %cst_75 = arith.constant dense<0.000000e+00> : vector<8x128xf32>
    %281 = tpu.matmul %280, %1, %cst_75 {dimension_numbers = #tpu.dot_dimension_numbers<[1], [0], [0], [1], [0, 0, 1, 1], [], []>} : vector<8x32xbf16>, vector<32x128xbf16>, vector<8x128xf32> -> vector<8x128xf32>
    %282 = arith.addf %279, %281 : vector<8x128xf32>
    %283 = vector.extract_strided_slice %282 {offsets = [0, 0], sizes = [8, 32], strides = [1, 1]} : vector<8x128xf32> to vector<8x32xf32>
    %284 = arith.negf %283 : vector<8x32xf32>
    %285 = math.exp %284 : vector<8x32xf32>
    %cst_76 = arith.constant 1.000000e+00 : f32
    %286 = vector.broadcast %cst_76 : f32 to vector<8x32xf32>
    %287 = arith.addf %286, %285 : vector<8x32xf32>
    %288 = arith.divf %286, %287 : vector<8x32xf32>
    %289 = vector.extract_strided_slice %282 {offsets = [0, 32], sizes = [8, 32], strides = [1, 1]} : vector<8x128xf32> to vector<8x32xf32>
    %290 = arith.negf %289 : vector<8x32xf32>
    %291 = math.exp %290 : vector<8x32xf32>
    %cst_77 = arith.constant 1.000000e+00 : f32
    %292 = vector.broadcast %cst_77 : f32 to vector<8x32xf32>
    %293 = arith.addf %292, %291 : vector<8x32xf32>
    %294 = arith.divf %292, %293 : vector<8x32xf32>
    %295 = vector.extract_strided_slice %282 {offsets = [0, 64], sizes = [8, 32], strides = [1, 1]} : vector<8x128xf32> to vector<8x32xf32>
    %296 = math.tanh %295 : vector<8x32xf32>
    %297 = vector.extract_strided_slice %282 {offsets = [0, 96], sizes = [8, 32], strides = [1, 1]} : vector<8x128xf32> to vector<8x32xf32>
    %298 = arith.negf %297 : vector<8x32xf32>
    %299 = math.exp %298 : vector<8x32xf32>
    %cst_78 = arith.constant 1.000000e+00 : f32
    %300 = vector.broadcast %cst_78 : f32 to vector<8x32xf32>
    %301 = arith.addf %300, %299 : vector<8x32xf32>
    %302 = arith.divf %300, %301 : vector<8x32xf32>
    %303 = arith.mulf %294, %265 : vector<8x32xf32>
    %304 = arith.mulf %288, %296 : vector<8x32xf32>
    %305 = arith.addf %303, %304 : vector<8x32xf32>
    %306 = math.tanh %305 : vector<8x32xf32>
    %307 = arith.mulf %302, %306 : vector<8x32xf32>
    %308 = vector.shape_cast %307 : vector<8x32xf32> to vector<1x8x32xf32>
    %309 = arith.truncf %308 : vector<1x8x32xf32> to vector<1x8x32xbf16>
    %310 = arith.index_cast %c0_i32_72 : i32 to index
    %c0_79 = arith.constant 0 : index
    %c0_80 = arith.constant 0 : index
    %311 = vector.load %arg9[%310, %c0_79, %c0_80] : memref<8x8x32xbf16, #tpu.memory_space<vmem>>, vector<1x8x32xbf16>
    tpu.vector_store %arg9[%310, %c0_79, %c0_80], %309 {strides = array<i32>} : memref<8x8x32xbf16, #tpu.memory_space<vmem>>, vector<1x8x32xbf16>,
    %c1_i32_81 = arith.constant 1 : i32
    %c8_i32_82 = arith.constant 8 : i32
    %312 = arith.muli %c1_i32_81, %c8_i32_82 : i32
    %313 = tpu.assume_multiple %312, 8 : i32
    %314 = arith.index_cast %313 : i32 to index
    %c0_83 = arith.constant 0 : index
    %315 = vector.load %arg10[%314, %c0_83] : memref<64x128xf32, #tpu.memory_space<vmem>>, vector<8x128xf32>
    %316 = arith.truncf %307 : vector<8x32xf32> to vector<8x32xbf16>
    %cst_84 = arith.constant dense<0.000000e+00> : vector<8x128xf32>
    %317 = tpu.matmul %316, %1, %cst_84 {dimension_numbers = #tpu.dot_dimension_numbers<[1], [0], [0], [1], [0, 0, 1, 1], [], []>} : vector<8x32xbf16>, vector<32x128xbf16>, vector<8x128xf32> -> vector<8x128xf32>
    %318 = arith.addf %315, %317 : vector<8x128xf32>
    %319 = vector.extract_strided_slice %318 {offsets = [0, 0], sizes = [8, 32], strides = [1, 1]} : vector<8x128xf32> to vector<8x32xf32>
    %320 = arith.negf %319 : vector<8x32xf32>
    %321 = math.exp %320 : vector<8x32xf32>
    %cst_85 = arith.constant 1.000000e+00 : f32
    %322 = vector.broadcast %cst_85 : f32 to vector<8x32xf32>
    %323 = arith.addf %322, %321 : vector<8x32xf32>
    %324 = arith.divf %322, %323 : vector<8x32xf32>
    %325 = vector.extract_strided_slice %318 {offsets = [0, 32], sizes = [8, 32], strides = [1, 1]} : vector<8x128xf32> to vector<8x32xf32>
    %326 = arith.negf %325 : vector<8x32xf32>
    %327 = math.exp %326 : vector<8x32xf32>
    %cst_86 = arith.constant 1.000000e+00 : f32
    %328 = vector.broadcast %cst_86 : f32 to vector<8x32xf32>
    %329 = arith.addf %328, %327 : vector<8x32xf32>
    %330 = arith.divf %328, %329 : vector<8x32xf32>
    %331 = vector.extract_strided_slice %318 {offsets = [0, 64], sizes = [8, 32], strides = [1, 1]} : vector<8x128xf32> to vector<8x32xf32>
    %332 = math.tanh %331 : vector<8x32xf32>
    %333 = vector.extract_strided_slice %318 {offsets = [0, 96], sizes = [8, 32], strides = [1, 1]} : vector<8x128xf32> to vector<8x32xf32>
    %334 = arith.negf %333 : vector<8x32xf32>
    %335 = math.exp %334 : vector<8x32xf32>
    %cst_87 = arith.constant 1.000000e+00 : f32
    %336 = vector.broadcast %cst_87 : f32 to vector<8x32xf32>
    %337 = arith.addf %336, %335 : vector<8x32xf32>
    %338 = arith.divf %336, %337 : vector<8x32xf32>
    %339 = arith.mulf %330, %305 : vector<8x32xf32>
    %340 = arith.mulf %324, %332 : vector<8x32xf32>
    %341 = arith.addf %339, %340 : vector<8x32xf32>
    %342 = math.tanh %341 : vector<8x32xf32>
    %343 = arith.mulf %338, %342 : vector<8x32xf32>
    %344 = vector.shape_cast %343 : vector<8x32xf32> to vector<1x8x32xf32>
    %345 = arith.truncf %344 : vector<1x8x32xf32> to vector<1x8x32xbf16>
    %346 = arith.index_cast %c1_i32_81 : i32 to index
    %c0_88 = arith.constant 0 : index
    %c0_89 = arith.constant 0 : index
    %347 = vector.load %arg9[%346, %c0_88, %c0_89] : memref<8x8x32xbf16, #tpu.memory_space<vmem>>, vector<1x8x32xbf16>
    tpu.vector_store %arg9[%346, %c0_88, %c0_89], %345 {strides = array<i32>} : memref<8x8x32xbf16, #tpu.memory_space<vmem>>, vector<1x8x32xbf16>,
    %c2_i32_90 = arith.constant 2 : i32
    %c8_i32_91 = arith.constant 8 : i32
    %348 = arith.muli %c2_i32_90, %c8_i32_91 : i32
    %349 = tpu.assume_multiple %348, 8 : i32
    %350 = arith.index_cast %349 : i32 to index
    %c0_92 = arith.constant 0 : index
    %351 = vector.load %arg10[%350, %c0_92] : memref<64x128xf32, #tpu.memory_space<vmem>>, vector<8x128xf32>
    %352 = arith.truncf %343 : vector<8x32xf32> to vector<8x32xbf16>
    %cst_93 = arith.constant dense<0.000000e+00> : vector<8x128xf32>
    %353 = tpu.matmul %352, %1, %cst_93 {dimension_numbers = #tpu.dot_dimension_numbers<[1], [0], [0], [1], [0, 0, 1, 1], [], []>} : vector<8x32xbf16>, vector<32x128xbf16>, vector<8x128xf32> -> vector<8x128xf32>
    %354 = arith.addf %351, %353 : vector<8x128xf32>
    %355 = vector.extract_strided_slice %354 {offsets = [0, 0], sizes = [8, 32], strides = [1, 1]} : vector<8x128xf32> to vector<8x32xf32>
    %356 = arith.negf %355 : vector<8x32xf32>
    %357 = math.exp %356 : vector<8x32xf32>
    %cst_94 = arith.constant 1.000000e+00 : f32
    %358 = vector.broadcast %cst_94 : f32 to vector<8x32xf32>
    %359 = arith.addf %358, %357 : vector<8x32xf32>
    %360 = arith.divf %358, %359 : vector<8x32xf32>
    %361 = vector.extract_strided_slice %354 {offsets = [0, 32], sizes = [8, 32], strides = [1, 1]} : vector<8x128xf32> to vector<8x32xf32>
    %362 = arith.negf %361 : vector<8x32xf32>
    %363 = math.exp %362 : vector<8x32xf32>
    %cst_95 = arith.constant 1.000000e+00 : f32
    %364 = vector.broadcast %cst_95 : f32 to vector<8x32xf32>
    %365 = arith.addf %364, %363 : vector<8x32xf32>
    %366 = arith.divf %364, %365 : vector<8x32xf32>
    %367 = vector.extract_strided_slice %354 {offsets = [0, 64], sizes = [8, 32], strides = [1, 1]} : vector<8x128xf32> to vector<8x32xf32>
    %368 = math.tanh %367 : vector<8x32xf32>
    %369 = vector.extract_strided_slice %354 {offsets = [0, 96], sizes = [8, 32], strides = [1, 1]} : vector<8x128xf32> to vector<8x32xf32>
    %370 = arith.negf %369 : vector<8x32xf32>
    %371 = math.exp %370 : vector<8x32xf32>
    %cst_96 = arith.constant 1.000000e+00 : f32
    %372 = vector.broadcast %cst_96 : f32 to vector<8x32xf32>
    %373 = arith.addf %372, %371 : vector<8x32xf32>
    %374 = arith.divf %372, %373 : vector<8x32xf32>
    %375 = arith.mulf %366, %341 : vector<8x32xf32>
    %376 = arith.mulf %360, %368 : vector<8x32xf32>
    %377 = arith.addf %375, %376 : vector<8x32xf32>
    %378 = math.tanh %377 : vector<8x32xf32>
    %379 = arith.mulf %374, %378 : vector<8x32xf32>
    %380 = vector.shape_cast %379 : vector<8x32xf32> to vector<1x8x32xf32>
    %381 = arith.truncf %380 : vector<1x8x32xf32> to vector<1x8x32xbf16>
    %382 = arith.index_cast %c2_i32_90 : i32 to index
    %c0_97 = arith.constant 0 : index
    %c0_98 = arith.constant 0 : index
    %383 = vector.load %arg9[%382, %c0_97, %c0_98] : memref<8x8x32xbf16, #tpu.memory_space<vmem>>, vector<1x8x32xbf16>
    tpu.vector_store %arg9[%382, %c0_97, %c0_98], %381 {strides = array<i32>} : memref<8x8x32xbf16, #tpu.memory_space<vmem>>, vector<1x8x32xbf16>,
    %c3_i32_99 = arith.constant 3 : i32
    %c8_i32_100 = arith.constant 8 : i32
    %384 = arith.muli %c3_i32_99, %c8_i32_100 : i32
    %385 = tpu.assume_multiple %384, 8 : i32
    %386 = arith.index_cast %385 : i32 to index
    %c0_101 = arith.constant 0 : index
    %387 = vector.load %arg10[%386, %c0_101] : memref<64x128xf32, #tpu.memory_space<vmem>>, vector<8x128xf32>
    %388 = arith.truncf %379 : vector<8x32xf32> to vector<8x32xbf16>
    %cst_102 = arith.constant dense<0.000000e+00> : vector<8x128xf32>
    %389 = tpu.matmul %388, %1, %cst_102 {dimension_numbers = #tpu.dot_dimension_numbers<[1], [0], [0], [1], [0, 0, 1, 1], [], []>} : vector<8x32xbf16>, vector<32x128xbf16>, vector<8x128xf32> -> vector<8x128xf32>
    %390 = arith.addf %387, %389 : vector<8x128xf32>
    %391 = vector.extract_strided_slice %390 {offsets = [0, 0], sizes = [8, 32], strides = [1, 1]} : vector<8x128xf32> to vector<8x32xf32>
    %392 = arith.negf %391 : vector<8x32xf32>
    %393 = math.exp %392 : vector<8x32xf32>
    %cst_103 = arith.constant 1.000000e+00 : f32
    %394 = vector.broadcast %cst_103 : f32 to vector<8x32xf32>
    %395 = arith.addf %394, %393 : vector<8x32xf32>
    %396 = arith.divf %394, %395 : vector<8x32xf32>
    %397 = vector.extract_strided_slice %390 {offsets = [0, 32], sizes = [8, 32], strides = [1, 1]} : vector<8x128xf32> to vector<8x32xf32>
    %398 = arith.negf %397 : vector<8x32xf32>
    %399 = math.exp %398 : vector<8x32xf32>
    %cst_104 = arith.constant 1.000000e+00 : f32
    %400 = vector.broadcast %cst_104 : f32 to vector<8x32xf32>
    %401 = arith.addf %400, %399 : vector<8x32xf32>
    %402 = arith.divf %400, %401 : vector<8x32xf32>
    %403 = vector.extract_strided_slice %390 {offsets = [0, 64], sizes = [8, 32], strides = [1, 1]} : vector<8x128xf32> to vector<8x32xf32>
    %404 = math.tanh %403 : vector<8x32xf32>
    %405 = vector.extract_strided_slice %390 {offsets = [0, 96], sizes = [8, 32], strides = [1, 1]} : vector<8x128xf32> to vector<8x32xf32>
    %406 = arith.negf %405 : vector<8x32xf32>
    %407 = math.exp %406 : vector<8x32xf32>
    %cst_105 = arith.constant 1.000000e+00 : f32
    %408 = vector.broadcast %cst_105 : f32 to vector<8x32xf32>
    %409 = arith.addf %408, %407 : vector<8x32xf32>
    %410 = arith.divf %408, %409 : vector<8x32xf32>
    %411 = arith.mulf %402, %377 : vector<8x32xf32>
    %412 = arith.mulf %396, %404 : vector<8x32xf32>
    %413 = arith.addf %411, %412 : vector<8x32xf32>
    %414 = math.tanh %413 : vector<8x32xf32>
    %415 = arith.mulf %410, %414 : vector<8x32xf32>
    %416 = vector.shape_cast %415 : vector<8x32xf32> to vector<1x8x32xf32>
    %417 = arith.truncf %416 : vector<1x8x32xf32> to vector<1x8x32xbf16>
    %418 = arith.index_cast %c3_i32_99 : i32 to index
    %c0_106 = arith.constant 0 : index
    %c0_107 = arith.constant 0 : index
    %419 = vector.load %arg9[%418, %c0_106, %c0_107] : memref<8x8x32xbf16, #tpu.memory_space<vmem>>, vector<1x8x32xbf16>
    tpu.vector_store %arg9[%418, %c0_106, %c0_107], %417 {strides = array<i32>} : memref<8x8x32xbf16, #tpu.memory_space<vmem>>, vector<1x8x32xbf16>,
    %c4_i32_108 = arith.constant 4 : i32
    %c8_i32_109 = arith.constant 8 : i32
    %420 = arith.muli %c4_i32_108, %c8_i32_109 : i32
    %421 = tpu.assume_multiple %420, 8 : i32
    %422 = arith.index_cast %421 : i32 to index
    %c0_110 = arith.constant 0 : index
    %423 = vector.load %arg10[%422, %c0_110] : memref<64x128xf32, #tpu.memory_space<vmem>>, vector<8x128xf32>
    %424 = arith.truncf %415 : vector<8x32xf32> to vector<8x32xbf16>
    %cst_111 = arith.constant dense<0.000000e+00> : vector<8x128xf32>
    %425 = tpu.matmul %424, %1, %cst_111 {dimension_numbers = #tpu.dot_dimension_numbers<[1], [0], [0], [1], [0, 0, 1, 1], [], []>} : vector<8x32xbf16>, vector<32x128xbf16>, vector<8x128xf32> -> vector<8x128xf32>
    %426 = arith.addf %423, %425 : vector<8x128xf32>
    %427 = vector.extract_strided_slice %426 {offsets = [0, 0], sizes = [8, 32], strides = [1, 1]} : vector<8x128xf32> to vector<8x32xf32>
    %428 = arith.negf %427 : vector<8x32xf32>
    %429 = math.exp %428 : vector<8x32xf32>
    %cst_112 = arith.constant 1.000000e+00 : f32
    %430 = vector.broadcast %cst_112 : f32 to vector<8x32xf32>
    %431 = arith.addf %430, %429 : vector<8x32xf32>
    %432 = arith.divf %430, %431 : vector<8x32xf32>
    %433 = vector.extract_strided_slice %426 {offsets = [0, 32], sizes = [8, 32], strides = [1, 1]} : vector<8x128xf32> to vector<8x32xf32>
    %434 = arith.negf %433 : vector<8x32xf32>
    %435 = math.exp %434 : vector<8x32xf32>
    %cst_113 = arith.constant 1.000000e+00 : f32
    %436 = vector.broadcast %cst_113 : f32 to vector<8x32xf32>
    %437 = arith.addf %436, %435 : vector<8x32xf32>
    %438 = arith.divf %436, %437 : vector<8x32xf32>
    %439 = vector.extract_strided_slice %426 {offsets = [0, 64], sizes = [8, 32], strides = [1, 1]} : vector<8x128xf32> to vector<8x32xf32>
    %440 = math.tanh %439 : vector<8x32xf32>
    %441 = vector.extract_strided_slice %426 {offsets = [0, 96], sizes = [8, 32], strides = [1, 1]} : vector<8x128xf32> to vector<8x32xf32>
    %442 = arith.negf %441 : vector<8x32xf32>
    %443 = math.exp %442 : vector<8x32xf32>
    %cst_114 = arith.constant 1.000000e+00 : f32
    %444 = vector.broadcast %cst_114 : f32 to vector<8x32xf32>
    %445 = arith.addf %444, %443 : vector<8x32xf32>
    %446 = arith.divf %444, %445 : vector<8x32xf32>
    %447 = arith.mulf %438, %413 : vector<8x32xf32>
    %448 = arith.mulf %432, %440 : vector<8x32xf32>
    %449 = arith.addf %447, %448 : vector<8x32xf32>
    %450 = math.tanh %449 : vector<8x32xf32>
    %451 = arith.mulf %446, %450 : vector<8x32xf32>
    %452 = vector.shape_cast %451 : vector<8x32xf32> to vector<1x8x32xf32>
    %453 = arith.truncf %452 : vector<1x8x32xf32> to vector<1x8x32xbf16>
    %454 = arith.index_cast %c4_i32_108 : i32 to index
    %c0_115 = arith.constant 0 : index
    %c0_116 = arith.constant 0 : index
    %455 = vector.load %arg9[%454, %c0_115, %c0_116] : memref<8x8x32xbf16, #tpu.memory_space<vmem>>, vector<1x8x32xbf16>
    tpu.vector_store %arg9[%454, %c0_115, %c0_116], %453 {strides = array<i32>} : memref<8x8x32xbf16, #tpu.memory_space<vmem>>, vector<1x8x32xbf16>,
    %c5_i32_117 = arith.constant 5 : i32
    %c8_i32_118 = arith.constant 8 : i32
    %456 = arith.muli %c5_i32_117, %c8_i32_118 : i32
    %457 = tpu.assume_multiple %456, 8 : i32
    %458 = arith.index_cast %457 : i32 to index
    %c0_119 = arith.constant 0 : index
    %459 = vector.load %arg10[%458, %c0_119] : memref<64x128xf32, #tpu.memory_space<vmem>>, vector<8x128xf32>
    %460 = arith.truncf %451 : vector<8x32xf32> to vector<8x32xbf16>
    %cst_120 = arith.constant dense<0.000000e+00> : vector<8x128xf32>
    %461 = tpu.matmul %460, %1, %cst_120 {dimension_numbers = #tpu.dot_dimension_numbers<[1], [0], [0], [1], [0, 0, 1, 1], [], []>} : vector<8x32xbf16>, vector<32x128xbf16>, vector<8x128xf32> -> vector<8x128xf32>
    %462 = arith.addf %459, %461 : vector<8x128xf32>
    %463 = vector.extract_strided_slice %462 {offsets = [0, 0], sizes = [8, 32], strides = [1, 1]} : vector<8x128xf32> to vector<8x32xf32>
    %464 = arith.negf %463 : vector<8x32xf32>
    %465 = math.exp %464 : vector<8x32xf32>
    %cst_121 = arith.constant 1.000000e+00 : f32
    %466 = vector.broadcast %cst_121 : f32 to vector<8x32xf32>
    %467 = arith.addf %466, %465 : vector<8x32xf32>
    %468 = arith.divf %466, %467 : vector<8x32xf32>
    %469 = vector.extract_strided_slice %462 {offsets = [0, 32], sizes = [8, 32], strides = [1, 1]} : vector<8x128xf32> to vector<8x32xf32>
    %470 = arith.negf %469 : vector<8x32xf32>
    %471 = math.exp %470 : vector<8x32xf32>
    %cst_122 = arith.constant 1.000000e+00 : f32
    %472 = vector.broadcast %cst_122 : f32 to vector<8x32xf32>
    %473 = arith.addf %472, %471 : vector<8x32xf32>
    %474 = arith.divf %472, %473 : vector<8x32xf32>
    %475 = vector.extract_strided_slice %462 {offsets = [0, 64], sizes = [8, 32], strides = [1, 1]} : vector<8x128xf32> to vector<8x32xf32>
    %476 = math.tanh %475 : vector<8x32xf32>
    %477 = vector.extract_strided_slice %462 {offsets = [0, 96], sizes = [8, 32], strides = [1, 1]} : vector<8x128xf32> to vector<8x32xf32>
    %478 = arith.negf %477 : vector<8x32xf32>
    %479 = math.exp %478 : vector<8x32xf32>
    %cst_123 = arith.constant 1.000000e+00 : f32
    %480 = vector.broadcast %cst_123 : f32 to vector<8x32xf32>
    %481 = arith.addf %480, %479 : vector<8x32xf32>
    %482 = arith.divf %480, %481 : vector<8x32xf32>
    %483 = arith.mulf %474, %449 : vector<8x32xf32>
    %484 = arith.mulf %468, %476 : vector<8x32xf32>
    %485 = arith.addf %483, %484 : vector<8x32xf32>
    %486 = math.tanh %485 : vector<8x32xf32>
    %487 = arith.mulf %482, %486 : vector<8x32xf32>
    %488 = vector.shape_cast %487 : vector<8x32xf32> to vector<1x8x32xf32>
    %489 = arith.truncf %488 : vector<1x8x32xf32> to vector<1x8x32xbf16>
    %490 = arith.index_cast %c5_i32_117 : i32 to index
    %c0_124 = arith.constant 0 : index
    %c0_125 = arith.constant 0 : index
    %491 = vector.load %arg9[%490, %c0_124, %c0_125] : memref<8x8x32xbf16, #tpu.memory_space<vmem>>, vector<1x8x32xbf16>
    tpu.vector_store %arg9[%490, %c0_124, %c0_125], %489 {strides = array<i32>} : memref<8x8x32xbf16, #tpu.memory_space<vmem>>, vector<1x8x32xbf16>,
    %c6_i32_126 = arith.constant 6 : i32
    %c8_i32_127 = arith.constant 8 : i32
    %492 = arith.muli %c6_i32_126, %c8_i32_127 : i32
    %493 = tpu.assume_multiple %492, 8 : i32
    %494 = arith.index_cast %493 : i32 to index
    %c0_128 = arith.constant 0 : index
    %495 = vector.load %arg10[%494, %c0_128] : memref<64x128xf32, #tpu.memory_space<vmem>>, vector<8x128xf32>
    %496 = arith.truncf %487 : vector<8x32xf32> to vector<8x32xbf16>
    %cst_129 = arith.constant dense<0.000000e+00> : vector<8x128xf32>
    %497 = tpu.matmul %496, %1, %cst_129 {dimension_numbers = #tpu.dot_dimension_numbers<[1], [0], [0], [1], [0, 0, 1, 1], [], []>} : vector<8x32xbf16>, vector<32x128xbf16>, vector<8x128xf32> -> vector<8x128xf32>
    %498 = arith.addf %495, %497 : vector<8x128xf32>
    %499 = vector.extract_strided_slice %498 {offsets = [0, 0], sizes = [8, 32], strides = [1, 1]} : vector<8x128xf32> to vector<8x32xf32>
    %500 = arith.negf %499 : vector<8x32xf32>
    %501 = math.exp %500 : vector<8x32xf32>
    %cst_130 = arith.constant 1.000000e+00 : f32
    %502 = vector.broadcast %cst_130 : f32 to vector<8x32xf32>
    %503 = arith.addf %502, %501 : vector<8x32xf32>
    %504 = arith.divf %502, %503 : vector<8x32xf32>
    %505 = vector.extract_strided_slice %498 {offsets = [0, 32], sizes = [8, 32], strides = [1, 1]} : vector<8x128xf32> to vector<8x32xf32>
    %506 = arith.negf %505 : vector<8x32xf32>
    %507 = math.exp %506 : vector<8x32xf32>
    %cst_131 = arith.constant 1.000000e+00 : f32
    %508 = vector.broadcast %cst_131 : f32 to vector<8x32xf32>
    %509 = arith.addf %508, %507 : vector<8x32xf32>
    %510 = arith.divf %508, %509 : vector<8x32xf32>
    %511 = vector.extract_strided_slice %498 {offsets = [0, 64], sizes = [8, 32], strides = [1, 1]} : vector<8x128xf32> to vector<8x32xf32>
    %512 = math.tanh %511 : vector<8x32xf32>
    %513 = vector.extract_strided_slice %498 {offsets = [0, 96], sizes = [8, 32], strides = [1, 1]} : vector<8x128xf32> to vector<8x32xf32>
    %514 = arith.negf %513 : vector<8x32xf32>
    %515 = math.exp %514 : vector<8x32xf32>
    %cst_132 = arith.constant 1.000000e+00 : f32
    %516 = vector.broadcast %cst_132 : f32 to vector<8x32xf32>
    %517 = arith.addf %516, %515 : vector<8x32xf32>
    %518 = arith.divf %516, %517 : vector<8x32xf32>
    %519 = arith.mulf %510, %485 : vector<8x32xf32>
    %520 = arith.mulf %504, %512 : vector<8x32xf32>
    %521 = arith.addf %519, %520 : vector<8x32xf32>
    %522 = math.tanh %521 : vector<8x32xf32>
    %523 = arith.mulf %518, %522 : vector<8x32xf32>
    %524 = vector.shape_cast %523 : vector<8x32xf32> to vector<1x8x32xf32>
    %525 = arith.truncf %524 : vector<1x8x32xf32> to vector<1x8x32xbf16>
    %526 = arith.index_cast %c6_i32_126 : i32 to index
    %c0_133 = arith.constant 0 : index
    %c0_134 = arith.constant 0 : index
    %527 = vector.load %arg9[%526, %c0_133, %c0_134] : memref<8x8x32xbf16, #tpu.memory_space<vmem>>, vector<1x8x32xbf16>
    tpu.vector_store %arg9[%526, %c0_133, %c0_134], %525 {strides = array<i32>} : memref<8x8x32xbf16, #tpu.memory_space<vmem>>, vector<1x8x32xbf16>,
    %c7_i32_135 = arith.constant 7 : i32
    %c8_i32_136 = arith.constant 8 : i32
    %528 = arith.muli %c7_i32_135, %c8_i32_136 : i32
    %529 = tpu.assume_multiple %528, 8 : i32
    %530 = arith.index_cast %529 : i32 to index
    %c0_137 = arith.constant 0 : index
    %531 = vector.load %arg10[%530, %c0_137] : memref<64x128xf32, #tpu.memory_space<vmem>>, vector<8x128xf32>
    %532 = arith.truncf %523 : vector<8x32xf32> to vector<8x32xbf16>
    %cst_138 = arith.constant dense<0.000000e+00> : vector<8x128xf32>
    %533 = tpu.matmul %532, %1, %cst_138 {dimension_numbers = #tpu.dot_dimension_numbers<[1], [0], [0], [1], [0, 0, 1, 1], [], []>} : vector<8x32xbf16>, vector<32x128xbf16>, vector<8x128xf32> -> vector<8x128xf32>
    %534 = arith.addf %531, %533 : vector<8x128xf32>
    %535 = vector.extract_strided_slice %534 {offsets = [0, 0], sizes = [8, 32], strides = [1, 1]} : vector<8x128xf32> to vector<8x32xf32>
    %536 = arith.negf %535 : vector<8x32xf32>
    %537 = math.exp %536 : vector<8x32xf32>
    %cst_139 = arith.constant 1.000000e+00 : f32
    %538 = vector.broadcast %cst_139 : f32 to vector<8x32xf32>
    %539 = arith.addf %538, %537 : vector<8x32xf32>
    %540 = arith.divf %538, %539 : vector<8x32xf32>
    %541 = vector.extract_strided_slice %534 {offsets = [0, 32], sizes = [8, 32], strides = [1, 1]} : vector<8x128xf32> to vector<8x32xf32>
    %542 = arith.negf %541 : vector<8x32xf32>
    %543 = math.exp %542 : vector<8x32xf32>
    %cst_140 = arith.constant 1.000000e+00 : f32
    %544 = vector.broadcast %cst_140 : f32 to vector<8x32xf32>
    %545 = arith.addf %544, %543 : vector<8x32xf32>
    %546 = arith.divf %544, %545 : vector<8x32xf32>
    %547 = vector.extract_strided_slice %534 {offsets = [0, 64], sizes = [8, 32], strides = [1, 1]} : vector<8x128xf32> to vector<8x32xf32>
    %548 = math.tanh %547 : vector<8x32xf32>
    %549 = vector.extract_strided_slice %534 {offsets = [0, 96], sizes = [8, 32], strides = [1, 1]} : vector<8x128xf32> to vector<8x32xf32>
    %550 = arith.negf %549 : vector<8x32xf32>
    %551 = math.exp %550 : vector<8x32xf32>
    %cst_141 = arith.constant 1.000000e+00 : f32
    %552 = vector.broadcast %cst_141 : f32 to vector<8x32xf32>
    %553 = arith.addf %552, %551 : vector<8x32xf32>
    %554 = arith.divf %552, %553 : vector<8x32xf32>
    %555 = arith.mulf %546, %521 : vector<8x32xf32>
    %556 = arith.mulf %540, %548 : vector<8x32xf32>
    %557 = arith.addf %555, %556 : vector<8x32xf32>
    %558 = math.tanh %557 : vector<8x32xf32>
    %559 = arith.mulf %554, %558 : vector<8x32xf32>
    %560 = vector.shape_cast %559 : vector<8x32xf32> to vector<1x8x32xf32>
    %561 = arith.truncf %560 : vector<1x8x32xf32> to vector<1x8x32xbf16>
    %562 = arith.index_cast %c7_i32_135 : i32 to index
    %c0_142 = arith.constant 0 : index
    %c0_143 = arith.constant 0 : index
    %563 = vector.load %arg9[%562, %c0_142, %c0_143] : memref<8x8x32xbf16, #tpu.memory_space<vmem>>, vector<1x8x32xbf16>
    tpu.vector_store %arg9[%562, %c0_142, %c0_143], %561 {strides = array<i32>} : memref<8x8x32xbf16, #tpu.memory_space<vmem>>, vector<1x8x32xbf16>,
    %c8_i32_144 = arith.constant 8 : i32
    return
  }
  func.func @transform_0(%arg0: i32) -> (i32, i32, i32) {
    %c0_i32 = arith.constant 0 : i32
    %c0_i32_0 = arith.constant 0 : i32
    %c0_i32_1 = arith.constant 0 : i32
    return %c0_i32, %arg0, %c0_i32_0 : i32, i32, i32
  }
  func.func @transform_1(%arg0: i32) -> (i32, i32, i32) {
    %c0_i32 = arith.constant 0 : i32
    %c0_i32_0 = arith.constant 0 : i32
    %c0_i32_1 = arith.constant 0 : i32
    return %c0_i32, %arg0, %c0_i32_0 : i32, i32, i32
  }
  func.func @transform_2(%arg0: i32) -> (i32, i32) {
    %c0_i32 = arith.constant 0 : i32
    %c0_i32_0 = arith.constant 0 : i32
    %c0_i32_1 = arith.constant 0 : i32
    return %c0_i32, %c0_i32_0 : i32, i32
  }
  func.func @transform_3(%arg0: i32) -> (i32, i32) {
    %c0_i32 = arith.constant 0 : i32
    %c0_i32_0 = arith.constant 0 : i32
    %c0_i32_1 = arith.constant 0 : i32
    return %c0_i32, %c0_i32_0 : i32, i32
  }
  func.func @transform_4(%arg0: i32) -> (i32, i32) {
    %c0_i32 = arith.constant 0 : i32
    %c0_i32_0 = arith.constant 0 : i32
    %c0_i32_1 = arith.constant 0 : i32
    return %c0_i32, %c0_i32_0 : i32, i32
  }
  func.func @transform_5(%arg0: i32) -> (i32, i32) {
    %c0_i32 = arith.constant 0 : i32
    %c0_i32_0 = arith.constant 0 : i32
    %c0_i32_1 = arith.constant 0 : i32
    return %c0_i32, %c0_i32_0 : i32, i32
  }
  func.func @transform_6(%arg0: i32) -> (i32, i32) {
    %c0_i32 = arith.constant 0 : i32
    %c0_i32_0 = arith.constant 0 : i32
    %c0_i32_1 = arith.constant 0 : i32
    return %c0_i32, %c0_i32_0 : i32, i32
  }
  func.func @transform_7(%arg0: i32) -> (i32, i32) {
    %c0_i32 = arith.constant 0 : i32
    %c0_i32_0 = arith.constant 0 : i32
    %c0_i32_1 = arith.constant 0 : i32
    return %c0_i32, %c0_i32_0 : i32, i32
  }
  func.func @transform_8(%arg0: i32) -> (i32, i32, i32) {
    %c0_i32 = arith.constant 0 : i32
    %c0_i32_0 = arith.constant 0 : i32
    %c0_i32_1 = arith.constant 0 : i32
    return %c0_i32, %arg0, %c0_i32_0 : i32, i32, i32
  }
}

</mosaic_0001>

<llo_original>
// kernel: tpu_custom_call.1
$region0: #{tpu_custom_call.1}
  #allocation0 [shape = 'u32[]', space=smem, size = 0x4, offset = 0x4, fixed_abs, tag = 'smem constant byte address 0x4 - core index']
  #allocation1 [shape = 'u32[144,128]{1,0:T(1,128)}', space=vmem, size = 0x12000, scoped, tag = 'internal scratch']
  #allocation2 [shape = 'f32[64,128]{1,0:T(8,128)}', space=vmem, size = 0x8000, scoped, tag = 'scratch operand']
  %s0 = inlined_call_operand.hbm [shape: bf16[8,8,16], index: 0, kind: input, shape index: {}]
  %s1 = inlined_call_operand.hbm [shape: bf16[8,8,16], index: 1, kind: input, shape index: {}]
  %s2 = inlined_call_operand.hbm [shape: bf16[16,128], index: 2, kind: input, shape index: {}]
  %s3 = inlined_call_operand.hbm [shape: bf16[32,128], index: 3, kind: input, shape index: {}]
  %s4 = inlined_call_operand.vmem [shape: f32[1,128], index: 4, kind: input, shape index: {}]
  %s5 = inlined_call_operand.hbm [shape: bf16[16,128], index: 5, kind: input, shape index: {}]
  %s6 = inlined_call_operand.vmem [shape: bf16[32,128], index: 6, kind: input, shape index: {}]
  %s7 = inlined_call_operand.vmem [shape: f32[1,128], index: 7, kind: input, shape index: {}]
  %s8 = inlined_call_operand.hbm [shape: bf16[8,8,32], index: 8, kind: output, shape index: {}]
  %s9 = sld [smem:[#allocation0]]
  $region62: #{tpu_custom_call.1} parent=0
    _
  %s11 = ssub.s32 1, %s9
  %s12 = scalar_select 0, %s11, %s9
  $region1: #{tpu_custom_call.1} parent=0
    #allocation3 [shape = 'u8[16384]{0}', space=vmem, size = 0x4000, scoped, tag = 'input window, operand 0, single buffered']
    #allocation4 [shape = 's32[1]{0}', space=sflag, size = 0x4, scoped, tag = 'scoped memory for tpu_custom_call.1']
    #allocation5 [shape = 's32[1]{0}', space=sflag, size = 0x4, scoped, tag = 'scoped memory for tpu_custom_call.1']
    #allocation6 [shape = 'u8[16384]{0}', space=vmem, size = 0x4000, scoped, tag = 'input window, operand 1, single buffered']
    #allocation7 [shape = 's32[1]{0}', space=sflag, size = 0x4, scoped, tag = 'scoped memory for tpu_custom_call.1']
    #allocation8 [shape = 'u8[4096]{0}', space=vmem, size = 0x1000, scoped, tag = 'input window, operand 2, single buffered']
    #allocation9 [shape = 'u8[8192]{0}', space=vmem, size = 0x2000, scoped, tag = 'input window, operand 3, single buffered']
    #allocation10 [shape = 's32[1]{0}', space=sflag, size = 0x4, scoped, tag = 'scoped memory for tpu_custom_call.1']
    #allocation11 [shape = 'u8[4096]{0}', space=vmem, size = 0x1000, scoped, tag = 'input window, operand 5, single buffered']
    #allocation12 [shape = 'u8[16384]{0}', space=vmem, size = 0x4000, scoped, tag = 'output window, operand 0, single buffered']
    %13 = vsyncpa [#allocation4], 0
    %14 = vsyncpa [#allocation7], 0
    %15 = vsyncpa [#allocation10], 0
    %16 = vsyncpa [#allocation5], 0
    // Predicated region
    $region2: #{tpu_custom_call.1} parent=1 // pred_check
      _
    $region3: #{tpu_custom_call.1} parent=1 // pred_check_branch
      %18 = sbr.rel (0) target = $region5
    $region4: #{tpu_custom_call.1} parent=1 // pred_region
      %s20 = ssub.s32 512, 512
      %21 = vsyncadd [#allocation4], %s20
      %s22 = sshll.u32 [#allocation3], 4
      %s23 = int_to_ptr.vmem [resolvable:$true] %s22
      %28 = dma.hbm_to_vmem [thread:$0]  %s0, 512, %s23, [#allocation4], 64, 64, 4
    $region5: #{tpu_custom_call.1} parent=1 // pred_fallthru
      _
    // Predicated region
    $region6: #{tpu_custom_call.1} parent=1 // pred_check
      _
    $region7: #{tpu_custom_call.1} parent=1 // pred_check_branch
      %30 = sbr.rel (0) target = $region9
    $region8: #{tpu_custom_call.1} parent=1 // pred_region
      %s32 = ssub.s32 512, 512
      %33 = vsyncadd [#allocation7], %s32
      %s34 = sshll.u32 [#allocation6], 4
      %s35 = int_to_ptr.vmem [resolvable:$true] %s34
      %40 = dma.hbm_to_vmem [thread:$0]  %s1, 512, %s35, [#allocation7], 64, 64, 4
    $region9: #{tpu_custom_call.1} parent=1 // pred_fallthru
      _
    // Predicated region
    $region10: #{tpu_custom_call.1} parent=1 // pred_check
      _
    $region11: #{tpu_custom_call.1} parent=1 // pred_check_branch
      %42 = sbr.rel (0) target = $region13
    $region12: #{tpu_custom_call.1} parent=1 // pred_region
      %s44 = ssub.s32 128, 128
      %45 = vsyncadd [#allocation7], %s44
      %s46 = sshll.u32 [#allocation8], 4
      %s47 = int_to_ptr.vmem [resolvable:$true] %s46
      %52 = dma.hbm_to_vmem [thread:$0]  %s2, 128, %s47, [#allocation7], 64, 64, 4
    $region13: #{tpu_custom_call.1} parent=1 // pred_fallthru
      _
    // Predicated region
    $region14: #{tpu_custom_call.1} parent=1 // pred_check
      _
    $region15: #{tpu_custom_call.1} parent=1 // pred_check_branch
      %54 = sbr.rel (0) target = $region17
    $region16: #{tpu_custom_call.1} parent=1 // pred_region
      %s56 = ssub.s32 256, 256
      %57 = vsyncadd [#allocation10], %s56
      %s58 = sshll.u32 [#allocation9], 4
      %s59 = int_to_ptr.vmem [resolvable:$true] %s58
      %64 = dma.hbm_to_vmem [thread:$0]  %s3, 256, %s59, [#allocation10], 64, 64, 4
    $region17: #{tpu_custom_call.1} parent=1 // pred_fallthru
      _
    // Predicated region
    $region18: #{tpu_custom_call.1} parent=1 // pred_check
      _
    $region19: #{tpu_custom_call.1} parent=1 // pred_check_branch
      %66 = sbr.rel (0) target = $region21
    $region20: #{tpu_custom_call.1} parent=1 // pred_region
      _
    $region21: #{tpu_custom_call.1} parent=1 // pred_fallthru
      _
    // Predicated region
    $region22: #{tpu_custom_call.1} parent=1 // pred_check
      _
    $region23: #{tpu_custom_call.1} parent=1 // pred_check_branch
      %68 = sbr.rel (0) target = $region25
    $region24: #{tpu_custom_call.1} parent=1 // pred_region
      %s70 = ssub.s32 128, 128
      %71 = vsyncadd [#allocation10], %s70
      %s72 = sshll.u32 [#allocation11], 4
      %s73 = int_to_ptr.vmem [resolvable:$true] %s72
      %78 = dma.hbm_to_vmem [thread:$0]  %s5, 128, %s73, [#allocation10], 64, 64, 4
    $region25: #{tpu_custom_call.1} parent=1 // pred_fallthru
      _
    // Predicated region
    $region26: #{tpu_custom_call.1} parent=1 // pred_check
      _
    $region27: #{tpu_custom_call.1} parent=1 // pred_check_branch
      %80 = sbr.rel (0) target = $region29
    $region28: #{tpu_custom_call.1} parent=1 // pred_region
      _
    $region29: #{tpu_custom_call.1} parent=1 // pred_fallthru
      _
    // Predicated region
    $region30: #{tpu_custom_call.1} parent=1 // pred_check
      _
    $region31: #{tpu_custom_call.1} parent=1 // pred_check_branch
      %82 = sbr.rel (0) target = $region33
    $region32: #{tpu_custom_call.1} parent=1 // pred_region
      _
    $region33: #{tpu_custom_call.1} parent=1 // pred_fallthru
      _
    // Predicated region
    $region34: #{tpu_custom_call.1} parent=1 // pred_check
      _
    $region35: #{tpu_custom_call.1} parent=1 // pred_check_branch
      %84 = sbr.rel (0) target = $region37
    $region36: #{tpu_custom_call.1} parent=1 // pred_region
      %85 = dma.done [#allocation4], 512
    $region37: #{tpu_custom_call.1} parent=1 // pred_fallthru
      _
    // Predicated region
    $region38: #{tpu_custom_call.1} parent=1 // pred_check
      _
    $region39: #{tpu_custom_call.1} parent=1 // pred_check_branch
      %87 = sbr.rel (0) target = $region41
    $region40: #{tpu_custom_call.1} parent=1 // pred_region
      %88 = dma.done [#allocation7], 512
    $region41: #{tpu_custom_call.1} parent=1 // pred_fallthru
      _
    // Predicated region
    $region42: #{tpu_custom_call.1} parent=1 // pred_check
      _
    $region43: #{tpu_custom_call.1} parent=1 // pred_check_branch
      %90 = sbr.rel (0) target = $region45
    $region44: #{tpu_custom_call.1} parent=1 // pred_region
      %91 = dma.done [#allocation7], 128
    $region45: #{tpu_custom_call.1} parent=1 // pred_fallthru
      _
    // Predicated region
    $region46: #{tpu_custom_call.1} parent=1 // pred_check
      _
    $region47: #{tpu_custom_call.1} parent=1 // pred_check_branch
      %93 = sbr.rel (0) target = $region49
    $region48: #{tpu_custom_call.1} parent=1 // pred_region
      %94 = dma.done [#allocation10], 256
    $region49: #{tpu_custom_call.1} parent=1 // pred_fallthru
      _
    // Predicated region
    $region50: #{tpu_custom_call.1} parent=1 // pred_check
      _
    $region51: #{tpu_custom_call.1} parent=1 // pred_check_branch
      %96 = sbr.rel (0) target = $region53
    $region52: #{tpu_custom_call.1} parent=1 // pred_region
      %97 = dma.done [#allocation10], 128
    $region53: #{tpu_custom_call.1} parent=1 // pred_fallthru
      _
    %v99 = vld [vmem:[#allocation9] sm:$0xf]
    %v100 = vld [vmem:[#allocation9 + $0x4] sm:$0xf]
    %v101 = vld [vmem:[#allocation9 + $0x8] sm:$0xf]
    %v102 = vld [vmem:[#allocation9 + $0xc] sm:$0xf]
    %v103 = vld [vmem:[%s6] sm:$0xf]
    %v104 = vld [vmem:[%s6 + $0x4] sm:$0xf]
    %v105 = vld [vmem:[%s6 + $0x8] sm:$0xf]
    %v106 = vld [vmem:[%s6 + $0xc] sm:$0xf]
    %v107 = vld [vmem:[#allocation3] sm:$0xf]
    %v108 = vld [vmem:[#allocation3 + $0x4] sm:$0xf]
    %v109 = vld [vmem:[#allocation3 + $0x8] sm:$0xf]
    %v110 = vld [vmem:[#allocation3 + $0xc] sm:$0xf]
    %v111 = vld [vmem:[#allocation3 + $0x10] sm:$0xf]
    %v112 = vld [vmem:[#allocation3 + $0x14] sm:$0xf]
    %v113 = vld [vmem:[#allocation3 + $0x18] sm:$0xf]
    %v114 = vld [vmem:[#allocation3 + $0x1c] sm:$0xf]
    %v115 = vld [vmem:[#allocation8] sm:$0xf]
    %v116 = vld [vmem:[#allocation8 + $0x4] sm:$0xf]
    %v117 = vld [vmem:[%s4] sm:$0x1]
    %v119 = vlaneseq
    %v120 = vshrl.u32 %v119, 7
    %v121 = vsub.s32 0, %v120
    %v122 = vrot.slane %v117, %v121
    %v132 = vunpack.c.l.b16 %v107
    %v133 = vunpack.c.l.b16 %v108
    %v134 = vunpack.c.l.b16 %v109
    %v135 = vunpack.c.l.b16 %v110
    %v136 = vunpack.c.l.b16 %v111
    %v137 = vunpack.c.l.b16 %v112
    %v138 = vunpack.c.l.b16 %v113
    %v139 = vunpack.c.l.b16 %v114
    %v140 = vpack.c.b16 %v133, %v132
    %v141 = vpack.c.b16 %v135, %v134
    %v142 = vpack.c.b16 %v137, %v136
    %v143 = vpack.c.b16 %v139, %v138
    %v146 = vunpack.c.l.b16 %v115
    %v147 = vunpack.c.l.b16 %v116
    %v148 = vpack.c.b16 %v147, %v146
    %vm150 = vcmask 130048
    %v152 = vsel %vm150, %v140, 0
    %v155 = vsel %vm150, %v141, 0
    %v158 = vsel %vm150, %v142, 0
    %v161 = vsel %vm150, %v143, 0
    %163 = vmatprep.subr.bf16.mxu0 0
    %164 = vmatpush1.bf16.msra.mxu0 %v148
    %165 = vmatprep.subr.bf16.mxu0 0
    %166 = vmatpush1.bf16.msra.mxu0 0
    %167 = vmatprep.subr.bf16.mxu0 0
    %168 = vmatpush1.bf16.msra.mxu0 0
    %169 = vmatprep.subr.bf16.mxu0 0
    %170 = vmatpush1.bf16.msra.mxu0 0
    %171 = vmatprep.subr.bf16.mxu0 0
    %172 = vmatpush1.bf16.msra.mxu0 0
    %173 = vmatprep.subr.bf16.mxu0 0
    %174 = vmatpush1.bf16.msra.mxu0 0
    %175 = vmatprep.subr.bf16.mxu0 0
    %176 = vmatpush1.bf16.msra.mxu0 0
    %177 = vmatprep.subr.bf16.mxu0 0
    %178 = vmatpush1.bf16.msra.mxu0 0
    %179 = vmatprep.subr.bf16.mxu0 0
    %180 = vmatpush1.bf16.msra.mxu0 0
    %181 = vmatprep.subr.bf16.mxu0 0
    %182 = vmatpush1.bf16.msra.mxu0 0
    %183 = vmatprep.subr.bf16.mxu0 0
    %184 = vmatpush1.bf16.msra.mxu0 0
    %185 = vmatprep.subr.bf16.mxu0 0
    %186 = vmatpush1.bf16.msra.mxu0 0
    %187 = vmatprep.subr.bf16.mxu0 0
    %188 = vmatpush1.bf16.msra.mxu0 0
    %189 = vmatprep.subr.bf16.mxu0 0
    %190 = vmatpush1.bf16.msra.mxu0 0
    %191 = vmatprep.subr.bf16.mxu0 0
    %192 = vmatpush1.bf16.msra.mxu0 0
    %193 = vmatprep.subr.bf16.mxu0 0
    %194 = vmatpush1.bf16.msra.mxu0 0
    %195 = vmatprep.mubr.bf16.mxu0 0
    %196 = vmatmul.mubr.bf16.gmra.mrb[0].mxu0 %v152
    %v197 = vpop.f32.mrb[0].mxu0
    %v198 = vadd.f32 %v122, %v197
    %v199 = vpop.f32.mrb[0].mxu0
    %v200 = vpop.f32.mrb[0].mxu0
    %v201 = vadd.f32 %v122, %v200
    %v202 = vpop.f32.mrb[0].mxu0
    %203 = vmatprep.mubr.bf16.mxu0 0
    %204 = vmatmul.mubr.bf16.gmra.mrb[0].mxu0 %v155
    %v205 = vpop.f32.mrb[0].mxu0
    %v206 = vadd.f32 %v122, %v205
    %v207 = vpop.f32.mrb[0].mxu0
    %v208 = vpop.f32.mrb[0].mxu0
    %v209 = vadd.f32 %v122, %v208
    %v210 = vpop.f32.mrb[0].mxu0
    %211 = vmatprep.mubr.bf16.mxu0 0
    %212 = vmatmul.mubr.bf16.gmra.mrb[0].mxu0 %v158
    %v213 = vpop.f32.mrb[0].mxu0
    %v214 = vadd.f32 %v122, %v213
    %v215 = vpop.f32.mrb[0].mxu0
    %v216 = vpop.f32.mrb[0].mxu0
    %v217 = vadd.f32 %v122, %v216
    %v218 = vpop.f32.mrb[0].mxu0
    %219 = vmatprep.mubr.bf16.mxu0 0
    %220 = vmatmul.mubr.bf16.gmra.mrb[0].mxu0 %v161
    %v221 = vpop.f32.mrb[0].mxu0
    %v222 = vadd.f32 %v122, %v221
    %v223 = vpop.f32.mrb[0].mxu0
    %v224 = vpop.f32.mrb[0].mxu0
    %v225 = vadd.f32 %v122, %v224
    %v226 = vpop.f32.mrb[0].mxu0
    %227 = vdwg.mxu0
    %228 = vst [vmem:[#allocation2] sm:$0xff] %v198
    %229 = vst [vmem:[#allocation2 + $0x8] sm:$0xff] %v201
    %230 = vst [vmem:[#allocation2 + $0x10] sm:$0xff] %v206
    %231 = vst [vmem:[#allocation2 + $0x18] sm:$0xff] %v209
    %232 = vst [vmem:[#allocation2 + $0x20] sm:$0xff] %v214
    %233 = vst [vmem:[#allocation2 + $0x28] sm:$0xff] %v217
    %234 = vst [vmem:[#allocation2 + $0x30] sm:$0xff] %v222
    %235 = vst [vmem:[#allocation2 + $0x38] sm:$0xff] %v225
    %v236 = vld [vmem:[#allocation2] sm:$0xff]
    %v241 = vunpack.c.l.b16 %v99
    %v242 = vunpack.c.l.b16 %v100
    %v243 = vunpack.c.l.b16 %v101
    %v244 = vunpack.c.l.b16 %v102
    %v245 = vpack.c.b16 %v242, %v241
    %v246 = vpack.c.b16 %v244, %v243
    %vm249 = vcmask 261120
    %v251 = vsel %vm249, 0, 0
    %253 = vmatprep.subr.bf16.mxu0 0
    %254 = vmatpush1.bf16.msra.mxu0 %v245
    %255 = vmatprep.subr.bf16.mxu0 0
    %256 = vmatpush1.bf16.msra.mxu0 %v246
    %257 = vmatprep.subr.bf16.mxu0 0
    %258 = vmatpush1.bf16.msra.mxu0 0
    %259 = vmatprep.subr.bf16.mxu0 0
    %260 = vmatpush1.bf16.msra.mxu0 0
    %261 = vmatprep.subr.bf16.mxu0 0
    %262 = vmatpush1.bf16.msra.mxu0 0
    %263 = vmatprep.subr.bf16.mxu0 0
    %264 = vmatpush1.bf16.msra.mxu0 0
    %265 = vmatprep.subr.bf16.mxu0 0
    %266 = vmatpush1.bf16.msra.mxu0 0
    %267 = vmatprep.subr.bf16.mxu0 0
    %268 = vmatpush1.bf16.msra.mxu0 0
    %269 = vmatprep.subr.bf16.mxu0 0
    %270 = vmatpush1.bf16.msra.mxu0 0
    %271 = vmatprep.subr.bf16.mxu0 0
    %272 = vmatpush1.bf16.msra.mxu0 0
    %273 = vmatprep.subr.bf16.mxu0 0
    %274 = vmatpush1.bf16.msra.mxu0 0
    %275 = vmatprep.subr.bf16.mxu0 0
    %276 = vmatpush1.bf16.msra.mxu0 0
    %277 = vmatprep.subr.bf16.mxu0 0
    %278 = vmatpush1.bf16.msra.mxu0 0
    %279 = vmatprep.subr.bf16.mxu0 0
    %280 = vmatpush1.bf16.msra.mxu0 0
    %281 = vmatprep.subr.bf16.mxu0 0
    %282 = vmatpush1.bf16.msra.mxu0 0
    %283 = vmatprep.subr.bf16.mxu0 0
    %284 = vmatpush1.bf16.msra.mxu0 0
    %285 = vmatprep.mubr.bf16.mxu0 0
    %286 = vmatmul.mubr.bf16.gmra.mrb[0].mxu0 %v251
    %v287 = vpop.f32.mrb[0].mxu0
    %v288 = vadd.f32 0.0, %v287
    %v289 = vpop.f32.mrb[0].mxu0
    %v290 = vpop.f32.mrb[0].mxu0
    %v291 = vpop.f32.mrb[0].mxu0
    %292 = vdwg.mxu0
    %v293 = vadd.f32 %v236, %v288
    %v294 = vxor.u32 %v293, 2147483648
    %v295 = vmul.f32 %v294, 1.442695
    %v296 = vpow.pop %v295
    %v297 = vadd.f32 %v296, 1.0
    %v298 = vrcp.pop %v297
    %v299 = vmul.f32 1.0, %v298
    %v300 = vtanh.pop %v293
    %v301 = vmul.f32 %v299, 0.0
    %303 = vrot.lane.b32.xlu0 %v300, 64
    %v304 = vpop.permute.xlu0 %303
    %v306 = vmul.f32 %v299, %v304
    %308 = vrot.lane.b32.xlu0 %v306, 32
    %v309 = vpop.permute.xlu0 %308
    %v311 = vadd.f32 %v301, %v309
    %v312 = vtanh.pop %v311
    %314 = vrot.lane.b32.xlu0 %v312, 64
    %v315 = vpop.permute.xlu0 %314
    %v317 = vmul.f32 %v299, %v315
    %s318 = scalar_lea.vmem [#allocation2], 8
    %v319 = vld [vmem:[%s318] sm:$0xff]
    %v320 = vpack.c.bf16 %v317, %v317
    %322 = vrot.lane.b32.xlu0 %v320, 32
    %v323 = vpop.permute.xlu0 %322
    %v325 = vsel %vm249, %v323, 0
    %327 = vmatprep.subr.bf16.mxu0 0
    %328 = vmatpush1.bf16.msra.mxu0 %v245
    %329 = vmatprep.subr.bf16.mxu0 0
    %330 = vmatpush1.bf16.msra.mxu0 %v246
    %331 = vmatprep.subr.bf16.mxu0 0
    %332 = vmatpush1.bf16.msra.mxu0 0
    %333 = vmatprep.subr.bf16.mxu0 0
    %334 = vmatpush1.bf16.msra.mxu0 0
    %335 = vmatprep.subr.bf16.mxu0 0
    %336 = vmatpush1.bf16.msra.mxu0 0
    %337 = vmatprep.subr.bf16.mxu0 0
    %338 = vmatpush1.bf16.msra.mxu0 0
    %339 = vmatprep.subr.bf16.mxu0 0
    %340 = vmatpush1.bf16.msra.mxu0 0
    %341 = vmatprep.subr.bf16.mxu0 0
    %342 = vmatpush1.bf16.msra.mxu0 0
    %343 = vmatprep.subr.bf16.mxu0 0
    %344 = vmatpush1.bf16.msra.mxu0 0
    %345 = vmatprep.subr.bf16.mxu0 0
    %346 = vmatpush1.bf16.msra.mxu0 0
    %347 = vmatprep.subr.bf16.mxu0 0
    %348 = vmatpush1.bf16.msra.mxu0 0
    %349 = vmatprep.subr.bf16.mxu0 0
    %350 = vmatpush1.bf16.msra.mxu0 0
    %351 = vmatprep.subr.bf16.mxu0 0
    %352 = vmatpush1.bf16.msra.mxu0 0
    %353 = vmatprep.subr.bf16.mxu0 0
    %354 = vmatpush1.bf16.msra.mxu0 0
    %355 = vmatprep.subr.bf16.mxu0 0
    %356 = vmatpush1.bf16.msra.mxu0 0
    %357 = vmatprep.subr.bf16.mxu0 0
    %358 = vmatpush1.bf16.msra.mxu0 0
    %359 = vmatprep.mubr.bf16.mxu0 0
    %360 = vmatmul.mubr.bf16.gmra.mrb[0].mxu0 %v325
    %v361 = vpop.f32.mrb[0].mxu0
    %v362 = vadd.f32 0.0, %v361
    %v363 = vpop.f32.mrb[0].mxu0
    %v364 = vpop.f32.mrb[0].mxu0
    %v365 = vpop.f32.mrb[0].mxu0
    %366 = vdwg.mxu0
    %v367 = vadd.f32 %v319, %v362
    %v368 = vxor.u32 %v367, 2147483648
    %v369 = vmul.f32 %v368, 1.442695
    %v370 = vpow.pop %v369
    %v371 = vadd.f32 %v370, 1.0
    %v372 = vrcp.pop %v371
    %v373 = vmul.f32 1.0, %v372
    %v374 = vtanh.pop %v367
    %v375 = vmul.f32 %v373, %v311
    %377 = vrot.lane.b32.xlu0 %v374, 64
    %v378 = vpop.permute.xlu0 %377
    %v380 = vmul.f32 %v373, %v378
    %382 = vrot.lane.b32.xlu0 %v380, 32
    %v383 = vpop.permute.xlu0 %382
    %v385 = vadd.f32 %v375, %v383
    %v386 = vtanh.pop %v385
    %388 = vrot.lane.b32.xlu0 %v386, 64
    %v389 = vpop.permute.xlu0 %388
    %v391 = vmul.f32 %v373, %v389
    %s392 = scalar_lea.vmem [#allocation2], 16
    %v393 = vld [vmem:[%s392] sm:$0xff]
    %v394 = vpack.c.bf16 %v391, %v391
    %396 = vrot.lane.b32.xlu0 %v394, 32
    %v397 = vpop.permute.xlu0 %396
    %v399 = vsel %vm249, %v397, 0
    %401 = vmatprep.subr.bf16.mxu0 0
    %402 = vmatpush1.bf16.msra.mxu0 %v245
    %403 = vmatprep.subr.bf16.mxu0 0
    %404 = vmatpush1.bf16.msra.mxu0 %v246
    %405 = vmatprep.subr.bf16.mxu0 0
    %406 = vmatpush1.bf16.msra.mxu0 0
    %407 = vmatprep.subr.bf16.mxu0 0
    %408 = vmatpush1.bf16.msra.mxu0 0
    %409 = vmatprep.subr.bf16.mxu0 0
    %410 = vmatpush1.bf16.msra.mxu0 0
    %411 = vmatprep.subr.bf16.mxu0 0
    %412 = vmatpush1.bf16.msra.mxu0 0
    %413 = vmatprep.subr.bf16.mxu0 0
    %414 = vmatpush1.bf16.msra.mxu0 0
    %415 = vmatprep.subr.bf16.mxu0 0
    %416 = vmatpush1.bf16.msra.mxu0 0
    %417 = vmatprep.subr.bf16.mxu0 0
    %418 = vmatpush1.bf16.msra.mxu0 0
    %419 = vmatprep.subr.bf16.mxu0 0
    %420 = vmatpush1.bf16.msra.mxu0 0
    %421 = vmatprep.subr.bf16.mxu0 0
    %422 = vmatpush1.bf16.msra.mxu0 0
    %423 = vmatprep.subr.bf16.mxu0 0
    %424 = vmatpush1.bf16.msra.mxu0 0
    %425 = vmatprep.subr.bf16.mxu0 0
    %426 = vmatpush1.bf16.msra.mxu0 0
    %427 = vmatprep.subr.bf16.mxu0 0
    %428 = vmatpush1.bf16.msra.mxu0 0
    %429 = vmatprep.subr.bf16.mxu0 0
    %430 = vmatpush1.bf16.msra.mxu0 0
    %431 = vmatprep.subr.bf16.mxu0 0
    %432 = vmatpush1.bf16.msra.mxu0 0
    %433 = vmatprep.mubr.bf16.mxu0 0
    %434 = vmatmul.mubr.bf16.gmra.mrb[0].mxu0 %v399
    %v435 = vpop.f32.mrb[0].mxu0
    %v436 = vadd.f32 0.0, %v435
    %v437 = vpop.f32.mrb[0].mxu0
    %v438 = vpop.f32.mrb[0].mxu0
    %v439 = vpop.f32.mrb[0].mxu0
    %440 = vdwg.mxu0
    %v441 = vadd.f32 %v393, %v436
    %v442 = vxor.u32 %v441, 2147483648
    %v443 = vmul.f32 %v442, 1.442695
    %v444 = vpow.pop %v443
    %v445 = vadd.f32 %v444, 1.0
    %v446 = vrcp.pop %v445
    %v447 = vmul.f32 1.0, %v446
    %v448 = vtanh.pop %v441
    %v449 = vmul.f32 %v447, %v385
    %451 = vrot.lane.b32.xlu0 %v448, 64
    %v452 = vpop.permute.xlu0 %451
    %v454 = vmul.f32 %v447, %v452
    %456 = vrot.lane.b32.xlu0 %v454, 32
    %v457 = vpop.permute.xlu0 %456
    %v459 = vadd.f32 %v449, %v457
    %v460 = vtanh.pop %v459
    %462 = vrot.lane.b32.xlu0 %v460, 64
    %v463 = vpop.permute.xlu0 %462
    %v465 = vmul.f32 %v447, %v463
    %s466 = scalar_lea.vmem [#allocation2], 24
    %v467 = vld [vmem:[%s466] sm:$0xff]
    %v468 = vpack.c.bf16 %v465, %v465
    %470 = vrot.lane.b32.xlu0 %v468, 32
    %v471 = vpop.permute.xlu0 %470
    %v473 = vsel %vm249, %v471, 0
    %475 = vmatprep.subr.bf16.mxu0 0
    %476 = vmatpush1.bf16.msra.mxu0 %v245
    %477 = vmatprep.subr.bf16.mxu0 0
    %478 = vmatpush1.bf16.msra.mxu0 %v246
    %479 = vmatprep.subr.bf16.mxu0 0
    %480 = vmatpush1.bf16.msra.mxu0 0
    %481 = vmatprep.subr.bf16.mxu0 0
    %482 = vmatpush1.bf16.msra.mxu0 0
    %483 = vmatprep.subr.bf16.mxu0 0
    %484 = vmatpush1.bf16.msra.mxu0 0
    %485 = vmatprep.subr.bf16.mxu0 0
    %486 = vmatpush1.bf16.msra.mxu0 0
    %487 = vmatprep.subr.bf16.mxu0 0
    %488 = vmatpush1.bf16.msra.mxu0 0
    %489 = vmatprep.subr.bf16.mxu0 0
    %490 = vmatpush1.bf16.msra.mxu0 0
    %491 = vmatprep.subr.bf16.mxu0 0
    %492 = vmatpush1.bf16.msra.mxu0 0
    %493 = vmatprep.subr.bf16.mxu0 0
    %494 = vmatpush1.bf16.msra.mxu0 0
    %495 = vmatprep.subr.bf16.mxu0 0
    %496 = vmatpush1.bf16.msra.mxu0 0
    %497 = vmatprep.subr.bf16.mxu0 0
    %498 = vmatpush1.bf16.msra.mxu0 0
    %499 = vmatprep.subr.bf16.mxu0 0
    %500 = vmatpush1.bf16.msra.mxu0 0
    %501 = vmatprep.subr.bf16.mxu0 0
    %502 = vmatpush1.bf16.msra.mxu0 0
    %503 = vmatprep.subr.bf16.mxu0 0
    %504 = vmatpush1.bf16.msra.mxu0 0
    %505 = vmatprep.subr.bf16.mxu0 0
    %506 = vmatpush1.bf16.msra.mxu0 0
    %507 = vmatprep.mubr.bf16.mxu0 0
    %508 = vmatmul.mubr.bf16.gmra.mrb[0].mxu0 %v473
    %v509 = vpop.f32.mrb[0].mxu0
    %v510 = vadd.f32 0.0, %v509
    %v511 = vpop.f32.mrb[0].mxu0
    %v512 = vpop.f32.mrb[0].mxu0
    %v513 = vpop.f32.mrb[0].mxu0
    %514 = vdwg.mxu0
    %v515 = vadd.f32 %v467, %v510
    %v516 = vxor.u32 %v515, 2147483648
    %v517 = vmul.f32 %v516, 1.442695
    %v518 = vpow.pop %v517
    %v519 = vadd.f32 %v518, 1.0
    %v520 = vrcp.pop %v519
    %v521 = vmul.f32 1.0, %v520
    %v522 = vtanh.pop %v515
    %v523 = vmul.f32 %v521, %v459
    %525 = vrot.lane.b32.xlu0 %v522, 64
    %v526 = vpop.permute.xlu0 %525
    %v528 = vmul.f32 %v521, %v526
    %530 = vrot.lane.b32.xlu0 %v528, 32
    %v531 = vpop.permute.xlu0 %530
    %v533 = vadd.f32 %v523, %v531
    %v534 = vtanh.pop %v533
    %536 = vrot.lane.b32.xlu0 %v534, 64
    %v537 = vpop.permute.xlu0 %536
    %v539 = vmul.f32 %v521, %v537
    %s540 = scalar_lea.vmem [#allocation2], 32
    %v541 = vld [vmem:[%s540] sm:$0xff]
    %v542 = vpack.c.bf16 %v539, %v539
    %544 = vrot.lane.b32.xlu0 %v542, 32
    %v545 = vpop.permute.xlu0 %544
    %v547 = vsel %vm249, %v545, 0
    %549 = vmatprep.subr.bf16.mxu0 0
    %550 = vmatpush1.bf16.msra.mxu0 %v245
    %551 = vmatprep.subr.bf16.mxu0 0
    %552 = vmatpush1.bf16.msra.mxu0 %v246
    %553 = vmatprep.subr.bf16.mxu0 0
    %554 = vmatpush1.bf16.msra.mxu0 0
    %555 = vmatprep.subr.bf16.mxu0 0
    %556 = vmatpush1.bf16.msra.mxu0 0
    %557 = vmatprep.subr.bf16.mxu0 0
    %558 = vmatpush1.bf16.msra.mxu0 0
    %559 = vmatprep.subr.bf16.mxu0 0
    %560 = vmatpush1.bf16.msra.mxu0 0
    %561 = vmatprep.subr.bf16.mxu0 0
    %562 = vmatpush1.bf16.msra.mxu0 0
    %563 = vmatprep.subr.bf16.mxu0 0
    %564 = vmatpush1.bf16.msra.mxu0 0
    %565 = vmatprep.subr.bf16.mxu0 0
    %566 = vmatpush1.bf16.msra.mxu0 0
    %567 = vmatprep.subr.bf16.mxu0 0
    %568 = vmatpush1.bf16.msra.mxu0 0
    %569 = vmatprep.subr.bf16.mxu0 0
    %570 = vmatpush1.bf16.msra.mxu0 0
    %571 = vmatprep.subr.bf16.mxu0 0
    %572 = vmatpush1.bf16.msra.mxu0 0
    %573 = vmatprep.subr.bf16.mxu0 0
    %574 = vmatpush1.bf16.msra.mxu0 0
    %575 = vmatprep.subr.bf16.mxu0 0
    %576 = vmatpush1.bf16.msra.mxu0 0
    %577 = vmatprep.subr.bf16.mxu0 0
    %578 = vmatpush1.bf16.msra.mxu0 0
    %579 = vmatprep.subr.bf16.mxu0 0
    %580 = vmatpush1.bf16.msra.mxu0 0
    %581 = vmatprep.mubr.bf16.mxu0 0
    %582 = vmatmul.mubr.bf16.gmra.mrb[0].mxu0 %v547
    %v583 = vpop.f32.mrb[0].mxu0
    %v584 = vadd.f32 0.0, %v583
    %v585 = vpop.f32.mrb[0].mxu0
    %v586 = vpop.f32.mrb[0].mxu0
    %v587 = vpop.f32.mrb[0].mxu0
    %588 = vdwg.mxu0
    %v589 = vadd.f32 %v541, %v584
    %v590 = vxor.u32 %v589, 2147483648
    %v591 = vmul.f32 %v590, 1.442695
    %v592 = vpow.pop %v591
    %v593 = vadd.f32 %v592, 1.0
    %v594 = vrcp.pop %v593
    %v595 = vmul.f32 1.0, %v594
    %v596 = vtanh.pop %v589
    %v597 = vmul.f32 %v595, %v533
    %599 = vrot.lane.b32.xlu0 %v596, 64
    %v600 = vpop.permute.xlu0 %599
    %v602 = vmul.f32 %v595, %v600
    %604 = vrot.lane.b32.xlu0 %v602, 32
    %v605 = vpop.permute.xlu0 %604
    %v607 = vadd.f32 %v597, %v605
    %v608 = vtanh.pop %v607
    %610 = vrot.lane.b32.xlu0 %v608, 64
    %v611 = vpop.permute.xlu0 %610
    %v613 = vmul.f32 %v595, %v611
    %s614 = scalar_lea.vmem [#allocation2], 40
    %v615 = vld [vmem:[%s614] sm:$0xff]
    %v616 = vpack.c.bf16 %v613, %v613
    %618 = vrot.lane.b32.xlu0 %v616, 32
    %v619 = vpop.permute.xlu0 %618
    %v621 = vsel %vm249, %v619, 0
    %623 = vmatprep.subr.bf16.mxu0 0
    %624 = vmatpush1.bf16.msra.mxu0 %v245
    %625 = vmatprep.subr.bf16.mxu0 0
    %626 = vmatpush1.bf16.msra.mxu0 %v246
    %627 = vmatprep.subr.bf16.mxu0 0
    %628 = vmatpush1.bf16.msra.mxu0 0
    %629 = vmatprep.subr.bf16.mxu0 0
    %630 = vmatpush1.bf16.msra.mxu0 0
    %631 = vmatprep.subr.bf16.mxu0 0
    %632 = vmatpush1.bf16.msra.mxu0 0
    %633 = vmatprep.subr.bf16.mxu0 0
    %634 = vmatpush1.bf16.msra.mxu0 0
    %635 = vmatprep.subr.bf16.mxu0 0
    %636 = vmatpush1.bf16.msra.mxu0 0
    %637 = vmatprep.subr.bf16.mxu0 0
    %638 = vmatpush1.bf16.msra.mxu0 0
    %639 = vmatprep.subr.bf16.mxu0 0
    %640 = vmatpush1.bf16.msra.mxu0 0
    %641 = vmatprep.subr.bf16.mxu0 0
    %642 = vmatpush1.bf16.msra.mxu0 0
    %643 = vmatprep.subr.bf16.mxu0 0
    %644 = vmatpush1.bf16.msra.mxu0 0
    %645 = vmatprep.subr.bf16.mxu0 0
    %646 = vmatpush1.bf16.msra.mxu0 0
    %647 = vmatprep.subr.bf16.mxu0 0
    %648 = vmatpush1.bf16.msra.mxu0 0
    %649 = vmatprep.subr.bf16.mxu0 0
    %650 = vmatpush1.bf16.msra.mxu0 0
    %651 = vmatprep.subr.bf16.mxu0 0
    %652 = vmatpush1.bf16.msra.mxu0 0
    %653 = vmatprep.subr.bf16.mxu0 0
    %654 = vmatpush1.bf16.msra.mxu0 0
    %655 = vmatprep.mubr.bf16.mxu0 0
    %656 = vmatmul.mubr.bf16.gmra.mrb[0].mxu0 %v621
    %v657 = vpop.f32.mrb[0].mxu0
    %v658 = vadd.f32 0.0, %v657
    %v659 = vpop.f32.mrb[0].mxu0
    %v660 = vpop.f32.mrb[0].mxu0
    %v661 = vpop.f32.mrb[0].mxu0
    %662 = vdwg.mxu0
    %v663 = vadd.f32 %v615, %v658
    %v664 = vxor.u32 %v663, 2147483648
    %v665 = vmul.f32 %v664, 1.442695
    %v666 = vpow.pop %v665
    %v667 = vadd.f32 %v666, 1.0
    %v668 = vrcp.pop %v667
    %v669 = vmul.f32 1.0, %v668
    %v670 = vtanh.pop %v663
    %v671 = vmul.f32 %v669, %v607
    %673 = vrot.lane.b32.xlu0 %v670, 64
    %v674 = vpop.permute.xlu0 %673
    %v676 = vmul.f32 %v669, %v674
    %678 = vrot.lane.b32.xlu0 %v676, 32
    %v679 = vpop.permute.xlu0 %678
    %v681 = vadd.f32 %v671, %v679
    %v682 = vtanh.pop %v681
    %684 = vrot.lane.b32.xlu0 %v682, 64
    %v685 = vpop.permute.xlu0 %684
    %v687 = vmul.f32 %v669, %v685
    %s688 = scalar_lea.vmem [#allocation2], 48
    %v689 = vld [vmem:[%s688] sm:$0xff]
    %v690 = vpack.c.bf16 %v687, %v687
    %692 = vrot.lane.b32.xlu0 %v690, 32
    %v693 = vpop.permute.xlu0 %692
    %v695 = vsel %vm249, %v693, 0
    %697 = vmatprep.subr.bf16.mxu0 0
    %698 = vmatpush1.bf16.msra.mxu0 %v245
    %699 = vmatprep.subr.bf16.mxu0 0
    %700 = vmatpush1.bf16.msra.mxu0 %v246
    %701 = vmatprep.subr.bf16.mxu0 0
    %702 = vmatpush1.bf16.msra.mxu0 0
    %703 = vmatprep.subr.bf16.mxu0 0
    %704 = vmatpush1.bf16.msra.mxu0 0
    %705 = vmatprep.subr.bf16.mxu0 0
    %706 = vmatpush1.bf16.msra.mxu0 0
    %707 = vmatprep.subr.bf16.mxu0 0
    %708 = vmatpush1.bf16.msra.mxu0 0
    %709 = vmatprep.subr.bf16.mxu0 0
    %710 = vmatpush1.bf16.msra.mxu0 0
    %711 = vmatprep.subr.bf16.mxu0 0
    %712 = vmatpush1.bf16.msra.mxu0 0
    %713 = vmatprep.subr.bf16.mxu0 0
    %714 = vmatpush1.bf16.msra.mxu0 0
    %715 = vmatprep.subr.bf16.mxu0 0
    %716 = vmatpush1.bf16.msra.mxu0 0
    %717 = vmatprep.subr.bf16.mxu0 0
    %718 = vmatpush1.bf16.msra.mxu0 0
    %719 = vmatprep.subr.bf16.mxu0 0
    %720 = vmatpush1.bf16.msra.mxu0 0
    %721 = vmatprep.subr.bf16.mxu0 0
    %722 = vmatpush1.bf16.msra.mxu0 0
    %723 = vmatprep.subr.bf16.mxu0 0
    %724 = vmatpush1.bf16.msra.mxu0 0
    %725 = vmatprep.subr.bf16.mxu0 0
    %726 = vmatpush1.bf16.msra.mxu0 0
    %727 = vmatprep.subr.bf16.mxu0 0
    %728 = vmatpush1.bf16.msra.mxu0 0
    %729 = vmatprep.mubr.bf16.mxu0 0
    %730 = vmatmul.mubr.bf16.gmra.mrb[0].mxu0 %v695
    %v731 = vpop.f32.mrb[0].mxu0
    %v732 = vadd.f32 0.0, %v731
    %v733 = vpop.f32.mrb[0].mxu0
    %v734 = vpop.f32.mrb[0].mxu0
    %v735 = vpop.f32.mrb[0].mxu0
    %736 = vdwg.mxu0
    %v737 = vadd.f32 %v689, %v732
    %v738 = vxor.u32 %v737, 2147483648
    %v739 = vmul.f32 %v738, 1.442695
    %v740 = vpow.pop %v739
    %v741 = vadd.f32 %v740, 1.0
    %v742 = vrcp.pop %v741
    %v743 = vmul.f32 1.0, %v742
    %v744 = vtanh.pop %v737
    %v745 = vmul.f32 %v743, %v681
    %747 = vrot.lane.b32.xlu0 %v744, 64
    %v748 = vpop.permute.xlu0 %747
    %v750 = vmul.f32 %v743, %v748
    %752 = vrot.lane.b32.xlu0 %v750, 32
    %v753 = vpop.permute.xlu0 %752
    %v755 = vadd.f32 %v745, %v753
    %v756 = vtanh.pop %v755
    %758 = vrot.lane.b32.xlu0 %v756, 64
    %v759 = vpop.permute.xlu0 %758
    %v761 = vmul.f32 %v743, %v759
    %s762 = scalar_lea.vmem [#allocation2], 56
    %v763 = vld [vmem:[%s762] sm:$0xff]
    %v764 = vpack.c.bf16 %v761, %v761
    %766 = vrot.lane.b32.xlu0 %v764, 32
    %v767 = vpop.permute.xlu0 %766
    %v769 = vsel %vm249, %v767, 0
    %771 = vmatprep.subr.bf16.mxu0 0
    %772 = vmatpush1.bf16.msra.mxu0 %v245
    %773 = vmatprep.subr.bf16.mxu0 0
    %774 = vmatpush1.bf16.msra.mxu0 %v246
    %775 = vmatprep.subr.bf16.mxu0 0
    %776 = vmatpush1.bf16.msra.mxu0 0
    %777 = vmatprep.subr.bf16.mxu0 0
    %778 = vmatpush1.bf16.msra.mxu0 0
    %779 = vmatprep.subr.bf16.mxu0 0
    %780 = vmatpush1.bf16.msra.mxu0 0
    %781 = vmatprep.subr.bf16.mxu0 0
    %782 = vmatpush1.bf16.msra.mxu0 0
    %783 = vmatprep.subr.bf16.mxu0 0
    %784 = vmatpush1.bf16.msra.mxu0 0
    %785 = vmatprep.subr.bf16.mxu0 0
    %786 = vmatpush1.bf16.msra.mxu0 0
    %787 = vmatprep.subr.bf16.mxu0 0
    %788 = vmatpush1.bf16.msra.mxu0 0
    %789 = vmatprep.subr.bf16.mxu0 0
    %790 = vmatpush1.bf16.msra.mxu0 0
    %791 = vmatprep.subr.bf16.mxu0 0
    %792 = vmatpush1.bf16.msra.mxu0 0
    %793 = vmatprep.subr.bf16.mxu0 0
    %794 = vmatpush1.bf16.msra.mxu0 0
    %795 = vmatprep.subr.bf16.mxu0 0
    %796 = vmatpush1.bf16.msra.mxu0 0
    %797 = vmatprep.subr.bf16.mxu0 0
    %798 = vmatpush1.bf16.msra.mxu0 0
    %799 = vmatprep.subr.bf16.mxu0 0
    %800 = vmatpush1.bf16.msra.mxu0 0
    %801 = vmatprep.subr.bf16.mxu0 0
    %802 = vmatpush1.bf16.msra.mxu0 0
    %803 = vmatprep.mubr.bf16.mxu0 0
    %804 = vmatmul.mubr.bf16.gmra.mrb[0].mxu0 %v769
    %v805 = vpop.f32.mrb[0].mxu0
    %v806 = vadd.f32 0.0, %v805
    %v807 = vpop.f32.mrb[0].mxu0
    %v808 = vpop.f32.mrb[0].mxu0
    %v809 = vpop.f32.mrb[0].mxu0
    %810 = vdwg.mxu0
    %v811 = vadd.f32 %v763, %v806
    %v812 = vxor.u32 %v811, 2147483648
    %v813 = vmul.f32 %v812, 1.442695
    %v814 = vpow.pop %v813
    %v815 = vadd.f32 %v814, 1.0
    %v816 = vrcp.pop %v815
    %v817 = vmul.f32 1.0, %v816
    %v818 = vtanh.pop %v811
    %v819 = vmul.f32 %v817, %v755
    %821 = vrot.lane.b32.xlu0 %v818, 64
    %v822 = vpop.permute.xlu0 %821
    %v824 = vmul.f32 %v817, %v822
    %826 = vrot.lane.b32.xlu0 %v824, 32
    %v827 = vpop.permute.xlu0 %826
    %v829 = vadd.f32 %v819, %v827
    %v830 = vtanh.pop %v829
    %832 = vrot.lane.b32.xlu0 %v830, 64
    %v833 = vpop.permute.xlu0 %832
    %v835 = vmul.f32 %v817, %v833
    %v836 = vld [vmem:[#allocation6] sm:$0xf]
    %v837 = vld [vmem:[#allocation6 + $0x4] sm:$0xf]
    %v838 = vld [vmem:[#allocation6 + $0x8] sm:$0xf]
    %v839 = vld [vmem:[#allocation6 + $0xc] sm:$0xf]
    %v840 = vld [vmem:[#allocation6 + $0x10] sm:$0xf]
    %v841 = vld [vmem:[#allocation6 + $0x14] sm:$0xf]
    %v842 = vld [vmem:[#allocation6 + $0x18] sm:$0xf]
    %v843 = vld [vmem:[#allocation6 + $0x1c] sm:$0xf]
    %v844 = vld [vmem:[#allocation11] sm:$0xf]
    %v845 = vld [vmem:[#allocation11 + $0x4] sm:$0xf]
    %v846 = vld [vmem:[%s7] sm:$0x1]
    %v848 = vlaneseq
    %v849 = vshrl.u32 %v848, 7
    %v850 = vsub.s32 0, %v849
    %v851 = vrot.slane %v846, %v850
    %v861 = vunpack.c.l.b16 %v836
    %v862 = vunpack.c.l.b16 %v837
    %v863 = vunpack.c.l.b16 %v838
    %v864 = vunpack.c.l.b16 %v839
    %v865 = vunpack.c.l.b16 %v840
    %v866 = vunpack.c.l.b16 %v841
    %v867 = vunpack.c.l.b16 %v842
    %v868 = vunpack.c.l.b16 %v843
    %v869 = vpack.c.b16 %v862, %v861
    %v870 = vpack.c.b16 %v864, %v863
    %v871 = vpack.c.b16 %v866, %v865
    %v872 = vpack.c.b16 %v868, %v867
    %v875 = vunpack.c.l.b16 %v844
    %v876 = vunpack.c.l.b16 %v845
    %v877 = vpack.c.b16 %v876, %v875
    %v880 = vsel %vm150, %v869, 0
    %v883 = vsel %vm150, %v870, 0
    %v886 = vsel %vm150, %v871, 0
    %v889 = vsel %vm150, %v872, 0
    %891 = vmatprep.subr.bf16.mxu0 0
    %892 = vmatpush1.bf16.msra.mxu0 %v877
    %893 = vmatprep.subr.bf16.mxu0 0
    %894 = vmatpush1.bf16.msra.mxu0 0
    %895 = vmatprep.subr.bf16.mxu0 0
    %896 = vmatpush1.bf16.msra.mxu0 0
    %897 = vmatprep.subr.bf16.mxu0 0
    %898 = vmatpush1.bf16.msra.mxu0 0
    %899 = vmatprep.subr.bf16.mxu0 0
    %900 = vmatpush1.bf16.msra.mxu0 0
    %901 = vmatprep.subr.bf16.mxu0 0
    %902 = vmatpush1.bf16.msra.mxu0 0
    %903 = vmatprep.subr.bf16.mxu0 0
    %904 = vmatpush1.bf16.msra.mxu0 0
    %905 = vmatprep.subr.bf16.mxu0 0
    %906 = vmatpush1.bf16.msra.mxu0 0
    %907 = vmatprep.subr.bf16.mxu0 0
    %908 = vmatpush1.bf16.msra.mxu0 0
    %909 = vmatprep.subr.bf16.mxu0 0
    %910 = vmatpush1.bf16.msra.mxu0 0
    %911 = vmatprep.subr.bf16.mxu0 0
    %912 = vmatpush1.bf16.msra.mxu0 0
    %913 = vmatprep.subr.bf16.mxu0 0
    %914 = vmatpush1.bf16.msra.mxu0 0
    %915 = vmatprep.subr.bf16.mxu0 0
    %916 = vmatpush1.bf16.msra.mxu0 0
    %917 = vmatprep.subr.bf16.mxu0 0
    %918 = vmatpush1.bf16.msra.mxu0 0
    %919 = vmatprep.subr.bf16.mxu0 0
    %920 = vmatpush1.bf16.msra.mxu0 0
    %921 = vmatprep.subr.bf16.mxu0 0
    %922 = vmatpush1.bf16.msra.mxu0 0
    %923 = vmatprep.mubr.bf16.mxu0 0
    %924 = vmatmul.mubr.bf16.gmra.mrb[0].mxu0 %v880
    %v925 = vpop.f32.mrb[0].mxu0
    %v926 = vadd.f32 %v851, %v925
    %v927 = vpop.f32.mrb[0].mxu0
    %v928 = vpop.f32.mrb[0].mxu0
    %v929 = vadd.f32 %v851, %v928
    %v930 = vpop.f32.mrb[0].mxu0
    %931 = vmatprep.mubr.bf16.mxu0 0
    %932 = vmatmul.mubr.bf16.gmra.mrb[0].mxu0 %v883
    %v933 = vpop.f32.mrb[0].mxu0
    %v934 = vadd.f32 %v851, %v933
    %v935 = vpop.f32.mrb[0].mxu0
    %v936 = vpop.f32.mrb[0].mxu0
    %v937 = vadd.f32 %v851, %v936
    %v938 = vpop.f32.mrb[0].mxu0
    %939 = vmatprep.mubr.bf16.mxu0 0
    %940 = vmatmul.mubr.bf16.gmra.mrb[0].mxu0 %v886
    %v941 = vpop.f32.mrb[0].mxu0
    %v942 = vadd.f32 %v851, %v941
    %v943 = vpop.f32.mrb[0].mxu0
    %v944 = vpop.f32.mrb[0].mxu0
    %v945 = vadd.f32 %v851, %v944
    %v946 = vpop.f32.mrb[0].mxu0
    %947 = vmatprep.mubr.bf16.mxu0 0
    %948 = vmatmul.mubr.bf16.gmra.mrb[0].mxu0 %v889
    %v949 = vpop.f32.mrb[0].mxu0
    %v950 = vadd.f32 %v851, %v949
    %v951 = vpop.f32.mrb[0].mxu0
    %v952 = vpop.f32.mrb[0].mxu0
    %v953 = vadd.f32 %v851, %v952
    %v954 = vpop.f32.mrb[0].mxu0
    %955 = vdwg.mxu0
    %956 = vst [vmem:[#allocation2] sm:$0xff] %v926
    %957 = vst [vmem:[#allocation2 + $0x8] sm:$0xff] %v929
    %958 = vst [vmem:[#allocation2 + $0x10] sm:$0xff] %v934
    %959 = vst [vmem:[#allocation2 + $0x18] sm:$0xff] %v937
    %960 = vst [vmem:[#allocation2 + $0x20] sm:$0xff] %v942
    %961 = vst [vmem:[#allocation2 + $0x28] sm:$0xff] %v945
    %962 = vst [vmem:[#allocation2 + $0x30] sm:$0xff] %v950
    %963 = vst [vmem:[#allocation2 + $0x38] sm:$0xff] %v953
    %v964 = vld [vmem:[#allocation2] sm:$0xff]
    %v965 = vpack.c.bf16 %v835, %v835
    %967 = vrot.lane.b32.xlu0 %v965, 32
    %v968 = vpop.permute.xlu0 %967
    %v973 = vunpack.c.l.b16 %v103
    %v974 = vunpack.c.l.b16 %v104
    %v975 = vunpack.c.l.b16 %v105
    %v976 = vunpack.c.l.b16 %v106
    %v977 = vpack.c.b16 %v974, %v973
    %v978 = vpack.c.b16 %v976, %v975
    %v982 = vsel %vm249, %v968, 0
    %984 = vmatprep.subr.bf16.mxu0 0
    %985 = vmatpush1.bf16.msra.mxu0 %v977
    %986 = vmatprep.subr.bf16.mxu0 0
    %987 = vmatpush1.bf16.msra.mxu0 %v978
    %988 = vmatprep.subr.bf16.mxu0 0
    %989 = vmatpush1.bf16.msra.mxu0 0
    %990 = vmatprep.subr.bf16.mxu0 0
    %991 = vmatpush1.bf16.msra.mxu0 0
    %992 = vmatprep.subr.bf16.mxu0 0
    %993 = vmatpush1.bf16.msra.mxu0 0
    %994 = vmatprep.subr.bf16.mxu0 0
    %995 = vmatpush1.bf16.msra.mxu0 0
    %996 = vmatprep.subr.bf16.mxu0 0
    %997 = vmatpush1.bf16.msra.mxu0 0
    %998 = vmatprep.subr.bf16.mxu0 0
    %999 = vmatpush1.bf16.msra.mxu0 0
    %1000 = vmatprep.subr.bf16.mxu0 0
    %1001 = vmatpush1.bf16.msra.mxu0 0
    %1002 = vmatprep.subr.bf16.mxu0 0
    %1003 = vmatpush1.bf16.msra.mxu0 0
    %1004 = vmatprep.subr.bf16.mxu0 0
    %1005 = vmatpush1.bf16.msra.mxu0 0
    %1006 = vmatprep.subr.bf16.mxu0 0
    %1007 = vmatpush1.bf16.msra.mxu0 0
    %1008 = vmatprep.subr.bf16.mxu0 0
    %1009 = vmatpush1.bf16.msra.mxu0 0
    %1010 = vmatprep.subr.bf16.mxu0 0
    %1011 = vmatpush1.bf16.msra.mxu0 0
    %1012 = vmatprep.subr.bf16.mxu0 0
    %1013 = vmatpush1.bf16.msra.mxu0 0
    %1014 = vmatprep.subr.bf16.mxu0 0
    %1015 = vmatpush1.bf16.msra.mxu0 0
    %1016 = vmatprep.mubr.bf16.mxu0 0
    %1017 = vmatmul.mubr.bf16.gmra.mrb[0].mxu0 %v982
    %v1018 = vpop.f32.mrb[0].mxu0
    %v1019 = vadd.f32 0.0, %v1018
    %v1020 = vpop.f32.mrb[0].mxu0
    %v1021 = vpop.f32.mrb[0].mxu0
    %v1022 = vpop.f32.mrb[0].mxu0
    %1023 = vdwg.mxu0
    %v1024 = vadd.f32 %v964, %v1019
    %v1025 = vxor.u32 %v1024, 2147483648
    %v1026 = vmul.f32 %v1025, 1.442695
    %v1027 = vpow.pop %v1026
    %v1028 = vadd.f32 %v1027, 1.0
    %v1029 = vrcp.pop %v1028
    %v1030 = vmul.f32 1.0, %v1029
    %v1031 = vtanh.pop %v1024
    %v1032 = vmul.f32 %v1030, %v829
    %1034 = vrot.lane.b32.xlu0 %v1031, 64
    %v1035 = vpop.permute.xlu0 %1034
    %v1037 = vmul.f32 %v1030, %v1035
    %1039 = vrot.lane.b32.xlu0 %v1037, 32
    %v1040 = vpop.permute.xlu0 %1039
    %v1042 = vadd.f32 %v1032, %v1040
    %v1043 = vtanh.pop %v1042
    %1045 = vrot.lane.b32.xlu0 %v1043, 64
    %v1046 = vpop.permute.xlu0 %1045
    %v1048 = vmul.f32 %v1030, %v1046
    %v1049 = vpack.c.bf16 %v1048, %v1048
    %v1051 = vunpack.c.l.b16 %v1049
    %v1052 = vpack.c.b16 %v1051, %v1051
    %1053 = vrot.lane.b32.xlu0 %v1052, 32
    %v1054 = vpop.permute.xlu0 %1053
    %vm1056 = vcmask 257024
    %1057 = vst.msk [vmem:[#allocation12] sm:$0xf] %vm1056, %v1054
    %v1058 = vld [vmem:[%s318] sm:$0xff]
    %1059 = vrot.lane.b32.xlu0 %v1049, 32
    %v1060 = vpop.permute.xlu0 %1059
    %v1062 = vsel %vm249, %v1060, 0
    %1064 = vmatprep.subr.bf16.mxu0 0
    %1065 = vmatpush1.bf16.msra.mxu0 %v977
    %1066 = vmatprep.subr.bf16.mxu0 0
    %1067 = vmatpush1.bf16.msra.mxu0 %v978
    %1068 = vmatprep.subr.bf16.mxu0 0
    %1069 = vmatpush1.bf16.msra.mxu0 0
    %1070 = vmatprep.subr.bf16.mxu0 0
    %1071 = vmatpush1.bf16.msra.mxu0 0
    %1072 = vmatprep.subr.bf16.mxu0 0
    %1073 = vmatpush1.bf16.msra.mxu0 0
    %1074 = vmatprep.subr.bf16.mxu0 0
    %1075 = vmatpush1.bf16.msra.mxu0 0
    %1076 = vmatprep.subr.bf16.mxu0 0
    %1077 = vmatpush1.bf16.msra.mxu0 0
    %1078 = vmatprep.subr.bf16.mxu0 0
    %1079 = vmatpush1.bf16.msra.mxu0 0
    %1080 = vmatprep.subr.bf16.mxu0 0
    %1081 = vmatpush1.bf16.msra.mxu0 0
    %1082 = vmatprep.subr.bf16.mxu0 0
    %1083 = vmatpush1.bf16.msra.mxu0 0
    %1084 = vmatprep.subr.bf16.mxu0 0
    %1085 = vmatpush1.bf16.msra.mxu0 0
    %1086 = vmatprep.subr.bf16.mxu0 0
    %1087 = vmatpush1.bf16.msra.mxu0 0
    %1088 = vmatprep.subr.bf16.mxu0 0
    %1089 = vmatpush1.bf16.msra.mxu0 0
    %1090 = vmatprep.subr.bf16.mxu0 0
    %1091 = vmatpush1.bf16.msra.mxu0 0
    %1092 = vmatprep.subr.bf16.mxu0 0
    %1093 = vmatpush1.bf16.msra.mxu0 0
    %1094 = vmatprep.subr.bf16.mxu0 0
    %1095 = vmatpush1.bf16.msra.mxu0 0
    %1096 = vmatprep.mubr.bf16.mxu0 0
    %1097 = vmatmul.mubr.bf16.gmra.mrb[0].mxu0 %v1062
    %v1098 = vpop.f32.mrb[0].mxu0
    %v1099 = vadd.f32 0.0, %v1098
    %v1100 = vpop.f32.mrb[0].mxu0
    %v1101 = vpop.f32.mrb[0].mxu0
    %v1102 = vpop.f32.mrb[0].mxu0
    %1103 = vdwg.mxu0
    %v1104 = vadd.f32 %v1058, %v1099
    %v1105 = vxor.u32 %v1104, 2147483648
    %v1106 = vmul.f32 %v1105, 1.442695
    %v1107 = vpow.pop %v1106
    %v1108 = vadd.f32 %v1107, 1.0
    %v1109 = vrcp.pop %v1108
    %v1110 = vmul.f32 1.0, %v1109
    %v1111 = vtanh.pop %v1104
    %v1112 = vmul.f32 %v1110, %v1042
    %1114 = vrot.lane.b32.xlu0 %v1111, 64
    %v1115 = vpop.permute.xlu0 %1114
    %v1117 = vmul.f32 %v1110, %v1115
    %1119 = vrot.lane.b32.xlu0 %v1117, 32
    %v1120 = vpop.permute.xlu0 %1119
    %v1122 = vadd.f32 %v1112, %v1120
    %v1123 = vtanh.pop %v1122
    %1125 = vrot.lane.b32.xlu0 %v1123, 64
    %v1126 = vpop.permute.xlu0 %1125
    %v1128 = vmul.f32 %v1110, %v1126
    %v1129 = vpack.c.bf16 %v1128, %v1128
    %v1131 = vunpack.c.l.b16 %v1129
    %v1132 = vpack.c.b16 %v1131, %v1131
    %1133 = vrot.lane.b32.xlu0 %v1132, 32
    %v1134 = vpop.permute.xlu0 %1133
    %s1136 = scalar_lea.vmem [#allocation12], 4
    %1137 = vst.msk [vmem:[%s1136] sm:$0xf] %vm1056, %v1134
    %v1138 = vld [vmem:[%s392] sm:$0xff]
    %1139 = vrot.lane.b32.xlu0 %v1129, 32
    %v1140 = vpop.permute.xlu0 %1139
    %v1142 = vsel %vm249, %v1140, 0
    %1144 = vmatprep.subr.bf16.mxu0 0
    %1145 = vmatpush1.bf16.msra.mxu0 %v977
    %1146 = vmatprep.subr.bf16.mxu0 0
    %1147 = vmatpush1.bf16.msra.mxu0 %v978
    %1148 = vmatprep.subr.bf16.mxu0 0
    %1149 = vmatpush1.bf16.msra.mxu0 0
    %1150 = vmatprep.subr.bf16.mxu0 0
    %1151 = vmatpush1.bf16.msra.mxu0 0
    %1152 = vmatprep.subr.bf16.mxu0 0
    %1153 = vmatpush1.bf16.msra.mxu0 0
    %1154 = vmatprep.subr.bf16.mxu0 0
    %1155 = vmatpush1.bf16.msra.mxu0 0
    %1156 = vmatprep.subr.bf16.mxu0 0
    %1157 = vmatpush1.bf16.msra.mxu0 0
    %1158 = vmatprep.subr.bf16.mxu0 0
    %1159 = vmatpush1.bf16.msra.mxu0 0
    %1160 = vmatprep.subr.bf16.mxu0 0
    %1161 = vmatpush1.bf16.msra.mxu0 0
    %1162 = vmatprep.subr.bf16.mxu0 0
    %1163 = vmatpush1.bf16.msra.mxu0 0
    %1164 = vmatprep.subr.bf16.mxu0 0
    %1165 = vmatpush1.bf16.msra.mxu0 0
    %1166 = vmatprep.subr.bf16.mxu0 0
    %1167 = vmatpush1.bf16.msra.mxu0 0
    %1168 = vmatprep.subr.bf16.mxu0 0
    %1169 = vmatpush1.bf16.msra.mxu0 0
    %1170 = vmatprep.subr.bf16.mxu0 0
    %1171 = vmatpush1.bf16.msra.mxu0 0
    %1172 = vmatprep.subr.bf16.mxu0 0
    %1173 = vmatpush1.bf16.msra.mxu0 0
    %1174 = vmatprep.subr.bf16.mxu0 0
    %1175 = vmatpush1.bf16.msra.mxu0 0
    %1176 = vmatprep.mubr.bf16.mxu0 0
    %1177 = vmatmul.mubr.bf16.gmra.mrb[0].mxu0 %v1142
    %v1178 = vpop.f32.mrb[0].mxu0
    %v1179 = vadd.f32 0.0, %v1178
    %v1180 = vpop.f32.mrb[0].mxu0
    %v1181 = vpop.f32.mrb[0].mxu0
    %v1182 = vpop.f32.mrb[0].mxu0
    %1183 = vdwg.mxu0
    %v1184 = vadd.f32 %v1138, %v1179
    %v1185 = vxor.u32 %v1184, 2147483648
    %v1186 = vmul.f32 %v1185, 1.442695
    %v1187 = vpow.pop %v1186
    %v1188 = vadd.f32 %v1187, 1.0
    %v1189 = vrcp.pop %v1188
    %v1190 = vmul.f32 1.0, %v1189
    %v1191 = vtanh.pop %v1184
    %v1192 = vmul.f32 %v1190, %v1122
    %1194 = vrot.lane.b32.xlu0 %v1191, 64
    %v1195 = vpop.permute.xlu0 %1194
    %v1197 = vmul.f32 %v1190, %v1195
    %1199 = vrot.lane.b32.xlu0 %v1197, 32
    %v1200 = vpop.permute.xlu0 %1199
    %v1202 = vadd.f32 %v1192, %v1200
    %v1203 = vtanh.pop %v1202
    %1205 = vrot.lane.b32.xlu0 %v1203, 64
    %v1206 = vpop.permute.xlu0 %1205
    %v1208 = vmul.f32 %v1190, %v1206
    %v1209 = vpack.c.bf16 %v1208, %v1208
    %v1211 = vunpack.c.l.b16 %v1209
    %v1212 = vpack.c.b16 %v1211, %v1211
    %1213 = vrot.lane.b32.xlu0 %v1212, 32
    %v1214 = vpop.permute.xlu0 %1213
    %s1216 = scalar_lea.vmem [#allocation12], 8
    %1217 = vst.msk [vmem:[%s1216] sm:$0xf] %vm1056, %v1214
    %v1218 = vld [vmem:[%s466] sm:$0xff]
    %1219 = vrot.lane.b32.xlu0 %v1209, 32
    %v1220 = vpop.permute.xlu0 %1219
    %v1222 = vsel %vm249, %v1220, 0
    %1224 = vmatprep.subr.bf16.mxu0 0
    %1225 = vmatpush1.bf16.msra.mxu0 %v977
    %1226 = vmatprep.subr.bf16.mxu0 0
    %1227 = vmatpush1.bf16.msra.mxu0 %v978
    %1228 = vmatprep.subr.bf16.mxu0 0
    %1229 = vmatpush1.bf16.msra.mxu0 0
    %1230 = vmatprep.subr.bf16.mxu0 0
    %1231 = vmatpush1.bf16.msra.mxu0 0
    %1232 = vmatprep.subr.bf16.mxu0 0
    %1233 = vmatpush1.bf16.msra.mxu0 0
    %1234 = vmatprep.subr.bf16.mxu0 0
    %1235 = vmatpush1.bf16.msra.mxu0 0
    %1236 = vmatprep.subr.bf16.mxu0 0
    %1237 = vmatpush1.bf16.msra.mxu0 0
    %1238 = vmatprep.subr.bf16.mxu0 0
    %1239 = vmatpush1.bf16.msra.mxu0 0
    %1240 = vmatprep.subr.bf16.mxu0 0
    %1241 = vmatpush1.bf16.msra.mxu0 0
    %1242 = vmatprep.subr.bf16.mxu0 0
    %1243 = vmatpush1.bf16.msra.mxu0 0
    %1244 = vmatprep.subr.bf16.mxu0 0
    %1245 = vmatpush1.bf16.msra.mxu0 0
    %1246 = vmatprep.subr.bf16.mxu0 0
    %1247 = vmatpush1.bf16.msra.mxu0 0
    %1248 = vmatprep.subr.bf16.mxu0 0
    %1249 = vmatpush1.bf16.msra.mxu0 0
    %1250 = vmatprep.subr.bf16.mxu0 0
    %1251 = vmatpush1.bf16.msra.mxu0 0
    %1252 = vmatprep.subr.bf16.mxu0 0
    %1253 = vmatpush1.bf16.msra.mxu0 0
    %1254 = vmatprep.subr.bf16.mxu0 0
    %1255 = vmatpush1.bf16.msra.mxu0 0
    %1256 = vmatprep.mubr.bf16.mxu0 0
    %1257 = vmatmul.mubr.bf16.gmra.mrb[0].mxu0 %v1222
    %v1258 = vpop.f32.mrb[0].mxu0
    %v1259 = vadd.f32 0.0, %v1258
    %v1260 = vpop.f32.mrb[0].mxu0
    %v1261 = vpop.f32.mrb[0].mxu0
    %v1262 = vpop.f32.mrb[0].mxu0
    %1263 = vdwg.mxu0
    %v1264 = vadd.f32 %v1218, %v1259
    %v1265 = vxor.u32 %v1264, 2147483648
    %v1266 = vmul.f32 %v1265, 1.442695
    %v1267 = vpow.pop %v1266
    %v1268 = vadd.f32 %v1267, 1.0
    %v1269 = vrcp.pop %v1268
    %v1270 = vmul.f32 1.0, %v1269
    %v1271 = vtanh.pop %v1264
    %v1272 = vmul.f32 %v1270, %v1202
    %1274 = vrot.lane.b32.xlu0 %v1271, 64
    %v1275 = vpop.permute.xlu0 %1274
    %v1277 = vmul.f32 %v1270, %v1275
    %1279 = vrot.lane.b32.xlu0 %v1277, 32
    %v1280 = vpop.permute.xlu0 %1279
    %v1282 = vadd.f32 %v1272, %v1280
    %v1283 = vtanh.pop %v1282
    %1285 = vrot.lane.b32.xlu0 %v1283, 64
    %v1286 = vpop.permute.xlu0 %1285
    %v1288 = vmul.f32 %v1270, %v1286
    %v1289 = vpack.c.bf16 %v1288, %v1288
    %v1291 = vunpack.c.l.b16 %v1289
    %v1292 = vpack.c.b16 %v1291, %v1291
    %1293 = vrot.lane.b32.xlu0 %v1292, 32
    %v1294 = vpop.permute.xlu0 %1293
    %s1296 = scalar_lea.vmem [#allocation12], 12
    %1297 = vst.msk [vmem:[%s1296] sm:$0xf] %vm1056, %v1294
    %v1298 = vld [vmem:[%s540] sm:$0xff]
    %1299 = vrot.lane.b32.xlu0 %v1289, 32
    %v1300 = vpop.permute.xlu0 %1299
    %v1302 = vsel %vm249, %v1300, 0
    %1304 = vmatprep.subr.bf16.mxu0 0
    %1305 = vmatpush1.bf16.msra.mxu0 %v977
    %1306 = vmatprep.subr.bf16.mxu0 0
    %1307 = vmatpush1.bf16.msra.mxu0 %v978
    %1308 = vmatprep.subr.bf16.mxu0 0
    %1309 = vmatpush1.bf16.msra.mxu0 0
    %1310 = vmatprep.subr.bf16.mxu0 0
    %1311 = vmatpush1.bf16.msra.mxu0 0
    %1312 = vmatprep.subr.bf16.mxu0 0
    %1313 = vmatpush1.bf16.msra.mxu0 0
    %1314 = vmatprep.subr.bf16.mxu0 0
    %1315 = vmatpush1.bf16.msra.mxu0 0
    %1316 = vmatprep.subr.bf16.mxu0 0
    %1317 = vmatpush1.bf16.msra.mxu0 0
    %1318 = vmatprep.subr.bf16.mxu0 0
    %1319 = vmatpush1.bf16.msra.mxu0 0
    %1320 = vmatprep.subr.bf16.mxu0 0
    %1321 = vmatpush1.bf16.msra.mxu0 0
    %1322 = vmatprep.subr.bf16.mxu0 0
    %1323 = vmatpush1.bf16.msra.mxu0 0
    %1324 = vmatprep.subr.bf16.mxu0 0
    %1325 = vmatpush1.bf16.msra.mxu0 0
    %1326 = vmatprep.subr.bf16.mxu0 0
    %1327 = vmatpush1.bf16.msra.mxu0 0
    %1328 = vmatprep.subr.bf16.mxu0 0
    %1329 = vmatpush1.bf16.msra.mxu0 0
    %1330 = vmatprep.subr.bf16.mxu0 0
    %1331 = vmatpush1.bf16.msra.mxu0 0
    %1332 = vmatprep.subr.bf16.mxu0 0
    %1333 = vmatpush1.bf16.msra.mxu0 0
    %1334 = vmatprep.subr.bf16.mxu0 0
    %1335 = vmatpush1.bf16.msra.mxu0 0
    %1336 = vmatprep.mubr.bf16.mxu0 0
    %1337 = vmatmul.mubr.bf16.gmra.mrb[0].mxu0 %v1302
    %v1338 = vpop.f32.mrb[0].mxu0
    %v1339 = vadd.f32 0.0, %v1338
    %v1340 = vpop.f32.mrb[0].mxu0
    %v1341 = vpop.f32.mrb[0].mxu0
    %v1342 = vpop.f32.mrb[0].mxu0
    %1343 = vdwg.mxu0
    %v1344 = vadd.f32 %v1298, %v1339
    %v1345 = vxor.u32 %v1344, 2147483648
    %v1346 = vmul.f32 %v1345, 1.442695
    %v1347 = vpow.pop %v1346
    %v1348 = vadd.f32 %v1347, 1.0
    %v1349 = vrcp.pop %v1348
    %v1350 = vmul.f32 1.0, %v1349
    %v1351 = vtanh.pop %v1344
    %v1352 = vmul.f32 %v1350, %v1282
    %1354 = vrot.lane.b32.xlu0 %v1351, 64
    %v1355 = vpop.permute.xlu0 %1354
    %v1357 = vmul.f32 %v1350, %v1355
    %1359 = vrot.lane.b32.xlu0 %v1357, 32
    %v1360 = vpop.permute.xlu0 %1359
    %v1362 = vadd.f32 %v1352, %v1360
    %v1363 = vtanh.pop %v1362
    %1365 = vrot.lane.b32.xlu0 %v1363, 64
    %v1366 = vpop.permute.xlu0 %1365
    %v1368 = vmul.f32 %v1350, %v1366
    %v1369 = vpack.c.bf16 %v1368, %v1368
    %v1371 = vunpack.c.l.b16 %v1369
    %v1372 = vpack.c.b16 %v1371, %v1371
    %1373 = vrot.lane.b32.xlu0 %v1372, 32
    %v1374 = vpop.permute.xlu0 %1373
    %s1376 = scalar_lea.vmem [#allocation12], 16
    %1377 = vst.msk [vmem:[%s1376] sm:$0xf] %vm1056, %v1374
    %v1378 = vld [vmem:[%s614] sm:$0xff]
    %1379 = vrot.lane.b32.xlu0 %v1369, 32
    %v1380 = vpop.permute.xlu0 %1379
    %v1382 = vsel %vm249, %v1380, 0
    %1384 = vmatprep.subr.bf16.mxu0 0
    %1385 = vmatpush1.bf16.msra.mxu0 %v977
    %1386 = vmatprep.subr.bf16.mxu0 0
    %1387 = vmatpush1.bf16.msra.mxu0 %v978
    %1388 = vmatprep.subr.bf16.mxu0 0
    %1389 = vmatpush1.bf16.msra.mxu0 0
    %1390 = vmatprep.subr.bf16.mxu0 0
    %1391 = vmatpush1.bf16.msra.mxu0 0
    %1392 = vmatprep.subr.bf16.mxu0 0
    %1393 = vmatpush1.bf16.msra.mxu0 0
    %1394 = vmatprep.subr.bf16.mxu0 0
    %1395 = vmatpush1.bf16.msra.mxu0 0
    %1396 = vmatprep.subr.bf16.mxu0 0
    %1397 = vmatpush1.bf16.msra.mxu0 0
    %1398 = vmatprep.subr.bf16.mxu0 0
    %1399 = vmatpush1.bf16.msra.mxu0 0
    %1400 = vmatprep.subr.bf16.mxu0 0
    %1401 = vmatpush1.bf16.msra.mxu0 0
    %1402 = vmatprep.subr.bf16.mxu0 0
    %1403 = vmatpush1.bf16.msra.mxu0 0
    %1404 = vmatprep.subr.bf16.mxu0 0
    %1405 = vmatpush1.bf16.msra.mxu0 0
    %1406 = vmatprep.subr.bf16.mxu0 0
    %1407 = vmatpush1.bf16.msra.mxu0 0
    %1408 = vmatprep.subr.bf16.mxu0 0
    %1409 = vmatpush1.bf16.msra.mxu0 0
    %1410 = vmatprep.subr.bf16.mxu0 0
    %1411 = vmatpush1.bf16.msra.mxu0 0
    %1412 = vmatprep.subr.bf16.mxu0 0
    %1413 = vmatpush1.bf16.msra.mxu0 0
    %1414 = vmatprep.subr.bf16.mxu0 0
    %1415 = vmatpush1.bf16.msra.mxu0 0
    %1416 = vmatprep.mubr.bf16.mxu0 0
    %1417 = vmatmul.mubr.bf16.gmra.mrb[0].mxu0 %v1382
    %v1418 = vpop.f32.mrb[0].mxu0
    %v1419 = vadd.f32 0.0, %v1418
    %v1420 = vpop.f32.mrb[0].mxu0
    %v1421 = vpop.f32.mrb[0].mxu0
    %v1422 = vpop.f32.mrb[0].mxu0
    %1423 = vdwg.mxu0
    %v1424 = vadd.f32 %v1378, %v1419
    %v1425 = vxor.u32 %v1424, 2147483648
    %v1426 = vmul.f32 %v1425, 1.442695
    %v1427 = vpow.pop %v1426
    %v1428 = vadd.f32 %v1427, 1.0
    %v1429 = vrcp.pop %v1428
    %v1430 = vmul.f32 1.0, %v1429
    %v1431 = vtanh.pop %v1424
    %v1432 = vmul.f32 %v1430, %v1362
    %1434 = vrot.lane.b32.xlu0 %v1431, 64
    %v1435 = vpop.permute.xlu0 %1434
    %v1437 = vmul.f32 %v1430, %v1435
    %1439 = vrot.lane.b32.xlu0 %v1437, 32
    %v1440 = vpop.permute.xlu0 %1439
    %v1442 = vadd.f32 %v1432, %v1440
    %v1443 = vtanh.pop %v1442
    %1445 = vrot.lane.b32.xlu0 %v1443, 64
    %v1446 = vpop.permute.xlu0 %1445
    %v1448 = vmul.f32 %v1430, %v1446
    %v1449 = vpack.c.bf16 %v1448, %v1448
    %v1451 = vunpack.c.l.b16 %v1449
    %v1452 = vpack.c.b16 %v1451, %v1451
    %1453 = vrot.lane.b32.xlu0 %v1452, 32
    %v1454 = vpop.permute.xlu0 %1453
    %s1456 = scalar_lea.vmem [#allocation12], 20
    %1457 = vst.msk [vmem:[%s1456] sm:$0xf] %vm1056, %v1454
    %v1458 = vld [vmem:[%s688] sm:$0xff]
    %1459 = vrot.lane.b32.xlu0 %v1449, 32
    %v1460 = vpop.permute.xlu0 %1459
    %v1462 = vsel %vm249, %v1460, 0
    %1464 = vmatprep.subr.bf16.mxu0 0
    %1465 = vmatpush1.bf16.msra.mxu0 %v977
    %1466 = vmatprep.subr.bf16.mxu0 0
    %1467 = vmatpush1.bf16.msra.mxu0 %v978
    %1468 = vmatprep.subr.bf16.mxu0 0
    %1469 = vmatpush1.bf16.msra.mxu0 0
    %1470 = vmatprep.subr.bf16.mxu0 0
    %1471 = vmatpush1.bf16.msra.mxu0 0
    %1472 = vmatprep.subr.bf16.mxu0 0
    %1473 = vmatpush1.bf16.msra.mxu0 0
    %1474 = vmatprep.subr.bf16.mxu0 0
    %1475 = vmatpush1.bf16.msra.mxu0 0
    %1476 = vmatprep.subr.bf16.mxu0 0
    %1477 = vmatpush1.bf16.msra.mxu0 0
    %1478 = vmatprep.subr.bf16.mxu0 0
    %1479 = vmatpush1.bf16.msra.mxu0 0
    %1480 = vmatprep.subr.bf16.mxu0 0
    %1481 = vmatpush1.bf16.msra.mxu0 0
    %1482 = vmatprep.subr.bf16.mxu0 0
    %1483 = vmatpush1.bf16.msra.mxu0 0
    %1484 = vmatprep.subr.bf16.mxu0 0
    %1485 = vmatpush1.bf16.msra.mxu0 0
    %1486 = vmatprep.subr.bf16.mxu0 0
    %1487 = vmatpush1.bf16.msra.mxu0 0
    %1488 = vmatprep.subr.bf16.mxu0 0
    %1489 = vmatpush1.bf16.msra.mxu0 0
    %1490 = vmatprep.subr.bf16.mxu0 0
    %1491 = vmatpush1.bf16.msra.mxu0 0
    %1492 = vmatprep.subr.bf16.mxu0 0
    %1493 = vmatpush1.bf16.msra.mxu0 0
    %1494 = vmatprep.subr.bf16.mxu0 0
    %1495 = vmatpush1.bf16.msra.mxu0 0
    %1496 = vmatprep.mubr.bf16.mxu0 0
    %1497 = vmatmul.mubr.bf16.gmra.mrb[0].mxu0 %v1462
    %v1498 = vpop.f32.mrb[0].mxu0
    %v1499 = vadd.f32 0.0, %v1498
    %v1500 = vpop.f32.mrb[0].mxu0
    %v1501 = vpop.f32.mrb[0].mxu0
    %v1502 = vpop.f32.mrb[0].mxu0
    %1503 = vdwg.mxu0
    %v1504 = vadd.f32 %v1458, %v1499
    %v1505 = vxor.u32 %v1504, 2147483648
    %v1506 = vmul.f32 %v1505, 1.442695
    %v1507 = vpow.pop %v1506
    %v1508 = vadd.f32 %v1507, 1.0
    %v1509 = vrcp.pop %v1508
    %v1510 = vmul.f32 1.0, %v1509
    %v1511 = vtanh.pop %v1504
    %v1512 = vmul.f32 %v1510, %v1442
    %1514 = vrot.lane.b32.xlu0 %v1511, 64
    %v1515 = vpop.permute.xlu0 %1514
    %v1517 = vmul.f32 %v1510, %v1515
    %1519 = vrot.lane.b32.xlu0 %v1517, 32
    %v1520 = vpop.permute.xlu0 %1519
    %v1522 = vadd.f32 %v1512, %v1520
    %v1523 = vtanh.pop %v1522
    %1525 = vrot.lane.b32.xlu0 %v1523, 64
    %v1526 = vpop.permute.xlu0 %1525
    %v1528 = vmul.f32 %v1510, %v1526
    %v1529 = vpack.c.bf16 %v1528, %v1528
    %v1531 = vunpack.c.l.b16 %v1529
    %v1532 = vpack.c.b16 %v1531, %v1531
    %1533 = vrot.lane.b32.xlu0 %v1532, 32
    %v1534 = vpop.permute.xlu0 %1533
    %s1536 = scalar_lea.vmem [#allocation12], 24
    %1537 = vst.msk [vmem:[%s1536] sm:$0xf] %vm1056, %v1534
    %v1538 = vld [vmem:[%s762] sm:$0xff]
    %1539 = vrot.lane.b32.xlu0 %v1529, 32
    %v1540 = vpop.permute.xlu0 %1539
    %v1542 = vsel %vm249, %v1540, 0
    %1544 = vmatprep.subr.bf16.mxu0 0
    %1545 = vmatpush1.bf16.msra.mxu0 %v977
    %1546 = vmatprep.subr.bf16.mxu0 0
    %1547 = vmatpush1.bf16.msra.mxu0 %v978
    %1548 = vmatprep.subr.bf16.mxu0 0
    %1549 = vmatpush1.bf16.msra.mxu0 0
    %1550 = vmatprep.subr.bf16.mxu0 0
    %1551 = vmatpush1.bf16.msra.mxu0 0
    %1552 = vmatprep.subr.bf16.mxu0 0
    %1553 = vmatpush1.bf16.msra.mxu0 0
    %1554 = vmatprep.subr.bf16.mxu0 0
    %1555 = vmatpush1.bf16.msra.mxu0 0
    %1556 = vmatprep.subr.bf16.mxu0 0
    %1557 = vmatpush1.bf16.msra.mxu0 0
    %1558 = vmatprep.subr.bf16.mxu0 0
    %1559 = vmatpush1.bf16.msra.mxu0 0
    %1560 = vmatprep.subr.bf16.mxu0 0
    %1561 = vmatpush1.bf16.msra.mxu0 0
    %1562 = vmatprep.subr.bf16.mxu0 0
    %1563 = vmatpush1.bf16.msra.mxu0 0
    %1564 = vmatprep.subr.bf16.mxu0 0
    %1565 = vmatpush1.bf16.msra.mxu0 0
    %1566 = vmatprep.subr.bf16.mxu0 0
    %1567 = vmatpush1.bf16.msra.mxu0 0
    %1568 = vmatprep.subr.bf16.mxu0 0
    %1569 = vmatpush1.bf16.msra.mxu0 0
    %1570 = vmatprep.subr.bf16.mxu0 0
    %1571 = vmatpush1.bf16.msra.mxu0 0
    %1572 = vmatprep.subr.bf16.mxu0 0
    %1573 = vmatpush1.bf16.msra.mxu0 0
    %1574 = vmatprep.subr.bf16.mxu0 0
    %1575 = vmatpush1.bf16.msra.mxu0 0
    %1576 = vmatprep.mubr.bf16.mxu0 0
    %1577 = vmatmul.mubr.bf16.gmra.mrb[0].mxu0 %v1542
    %v1578 = vpop.f32.mrb[0].mxu0
    %v1579 = vadd.f32 0.0, %v1578
    %v1580 = vpop.f32.mrb[0].mxu0
    %v1581 = vpop.f32.mrb[0].mxu0
    %v1582 = vpop.f32.mrb[0].mxu0
    %1583 = vdwg.mxu0
    %v1584 = vadd.f32 %v1538, %v1579
    %v1585 = vxor.u32 %v1584, 2147483648
    %v1586 = vmul.f32 %v1585, 1.442695
    %v1587 = vpow.pop %v1586
    %v1588 = vadd.f32 %v1587, 1.0
    %v1589 = vrcp.pop %v1588
    %v1590 = vmul.f32 1.0, %v1589
    %v1591 = vtanh.pop %v1584
    %v1592 = vmul.f32 %v1590, %v1522
    %1594 = vrot.lane.b32.xlu0 %v1591, 64
    %v1595 = vpop.permute.xlu0 %1594
    %v1597 = vmul.f32 %v1590, %v1595
    %1599 = vrot.lane.b32.xlu0 %v1597, 32
    %v1600 = vpop.permute.xlu0 %1599
    %v1602 = vadd.f32 %v1592, %v1600
    %v1603 = vtanh.pop %v1602
    %1605 = vrot.lane.b32.xlu0 %v1603, 64
    %v1606 = vpop.permute.xlu0 %1605
    %v1608 = vmul.f32 %v1590, %v1606
    %v1609 = vpack.c.bf16 %v1608, %v1608
    %v1611 = vunpack.c.l.b16 %v1609
    %v1612 = vpack.c.b16 %v1611, %v1611
    %1613 = vrot.lane.b32.xlu0 %v1612, 32
    %v1614 = vpop.permute.xlu0 %1613
    %s1616 = scalar_lea.vmem [#allocation12], 28
    %1617 = vst.msk [vmem:[%s1616] sm:$0xf] %vm1056, %v1614
    // Predicated region
    $region54: #{tpu_custom_call.1} parent=1 // pred_check
      _
    $region55: #{tpu_custom_call.1} parent=1 // pred_check_branch
      %1619 = sbr.rel (0) target = $region57
    $region56: #{tpu_custom_call.1} parent=1 // pred_region
      %s1621 = ssub.s32 512, 512
      %1622 = vsyncadd [#allocation5], %s1621
      %s1623 = sshll.u32 [#allocation12], 4
      %s1624 = int_to_ptr.vmem [resolvable:$true] %s1623
      %1629 = dma.vmem_to_hbm [thread:$0]  %s1624, 512, %s8, [#allocation5], 64, 64, 4
    $region57: #{tpu_custom_call.1} parent=1 // pred_fallthru
      _
    // Predicated region
    $region58: #{tpu_custom_call.1} parent=1 // pred_check
      _
    $region59: #{tpu_custom_call.1} parent=1 // pred_check_branch
      %1631 = sbr.rel (0) target = $region61
    $region60: #{tpu_custom_call.1} parent=1 // pred_region
      %1632 = dma.done [#allocation5], 512
    $region61: #{tpu_custom_call.1} parent=1 // pred_fallthru
      _
    %1633 = vsyncpa [#allocation4], 1
    %1634 = vsyncpa [#allocation7], 1
    %1635 = vsyncpa [#allocation10], 1
    %1636 = vsyncpa [#allocation5], 1

</llo_original>
